<compile_context>
chip_gen: v5e
topology: v5e:2x2
jax: 0.10.0
libtpu: 0.0.40
codegen_flags: <defaults>
</compile_context>

<pallas_src>
import numpy as np
import jax
import jax.numpy as jnp
from jax.experimental import pallas as pl
from jax.experimental.pallas import tpu as pltpu


_ROW_PAD = -2_000_000_000   # sentinels: real HDBSCAN labels are >= -1 and the
_COL_PAD = -2_000_000_001   # two sentinels differ, so padded rows never match.
_RANGE_PAD = 2 ** 30        # "huge" label for padded rows in block-range calc.


def _round_up(x, m):
    return ((x + m - 1) // m) * m


def ssl_pairwise_kernel(ti_ref, tj_ref, tw_ref, bmin_ref, bmax_ref,
                        xr_ref, xc_ref, sqr_ref, sqc_ref,
                        lr_ref, lc_ref, ir_ref, ic_ref,
                        out_ref):
    """One (T, T) tile pair of the masked pairwise-distance sum.

    Scalar prefetch (SMEM):
      ti/tj/tw : flat (num_cores * pairs_per_core,) int32 tile-pair list
                 (row block, col block, weight 0=pad / 1=diag / 2=off-diag)
      bmin/bmax: (gi,) int32 per-row-block label range (rows sorted by label)
    VMEM inputs:
      xr/xc    : (T, Dp) normalized row/col block embeddings (MXU feed)
      sqr/sqc  : (T, 1) / (1, T) f32 squared norms of the MXU feed
      lr/lc    : (T, 1) / (1, T) int32 labels
      ir/ic    : (T, 1) / (1, T) int32 global row indices (diagonal exclusion)
    Output:
      out_ref  : (1, 8, 128) f32 per-core accumulator, VMEM-resident across
                 the "arbitrary" pair axis.
    """
    c = pl.program_id(0)
    p = pl.program_id(1)

    @pl.when(p == 0)
    def _():
        out_ref[...] = jnp.zeros_like(out_ref)

    flat = c * pl.num_programs(1) + p
    bi = ti_ref[flat]
    bj = tj_ref[flat]
    w = tw_ref[flat]

    # Skip padded pair entries and tiles whose (sorted) label ranges cannot
    # overlap: for label-sorted rows same-label pairs are block-diagonal.
    overlap = jnp.logical_and(bmax_ref[bi] >= bmin_ref[bj],
                              bmax_ref[bj] >= bmin_ref[bi])
    live = jnp.logical_and(overlap, w > 0)

    @pl.when(live)
    def _():
        # MXU: gram[a, b] = <xn_row_a, xn_col_b>   (f32 accumulation).
        gram = jax.lax.dot_general(
            xr_ref[...], xc_ref[...],
            dimension_numbers=(((1,), (1,)), ((), ())),
            preferred_element_type=jnp.float32)                      # (T, T)

        # Pairwise Euclidean distances via the dot trick (elementwise in f32).
        d2 = jnp.maximum((sqc_ref[...] - 2.0 * gram) + sqr_ref[...], 0.0)
        dist = jnp.sqrt(d2)                                          # (T, T)

        # Same-cluster mask (padded rows carry non-matching sentinel labels);
        # the global-index inequality excludes the true diagonal (exactly 0 in
        # exact math; masking keeps MXU rounding out of sqrt near 0).
        keep = jnp.logical_and(lr_ref[...] == lc_ref[...],
                               ir_ref[...] != ic_ref[...])
        masked = jnp.where(keep, dist, 0.0)                          # (T, T)

        # Reduce to an (8, 128) partial with pure per-vreg VPU adds:
        # fold lane chunks of 128, then fold sublane groups of 8 rows.
        tm, tn = masked.shape
        folded = masked[:, 0:128]
        for k in range(1, tn // 128):
            folded = folded + masked[:, k * 128:(k + 1) * 128]       # (T, 128)
        part = folded[0:8, :]
        for r in range(1, tm // 8):
            part = part + folded[r * 8:(r + 1) * 8, :]               # (8, 128)

        # Off-diagonal tile pairs count twice (distance-matrix symmetry).
        out_ref[0] += w.astype(jnp.float32) * part


def self_supervised_loss(embeddings, cluster_labels, *, tile=512,
                         matmul_dtype=None, num_cores=2,
                         vmem_limit_bytes=None):
    """embeddings: (N, D) float; cluster_labels: (N,) int. Returns scalar f32."""
    x = jnp.asarray(embeddings, jnp.float32)
    lab = jnp.asarray(cluster_labels).astype(jnp.int32)
    N, D = x.shape

    # --- unique-label count (PyTorch divides by len(unique_labels)) ---------
    lab_sorted = jnp.sort(lab)
    num_unique = 1 + jnp.sum((lab_sorted[1:] != lab_sorted[:-1]).astype(jnp.int32))

    # --- sort rows by label: same-label pairs become block-diagonal ---------
    order = jnp.argsort(lab)
    x = x[order]
    lab_s = lab[order]

    # --- pad to TPU-friendly shapes -----------------------------------------
    t = max(128, min(_round_up(tile, 128), _round_up(N, 128)))  # mult of 128
    Np = _round_up(N, t)
    Dp = _round_up(D, 128)
    gi = Np // t

    if matmul_dtype is None:
        # At small D the MXU is nearly idle, so f32 gram is a free accuracy win.
        matmul_dtype = jnp.float32 if Dp <= 256 else jnp.bfloat16

    x_p = jnp.zeros((Np, Dp), jnp.float32).at[:N, :D].set(x)

    # --- hoisted F.normalize(p=2, dim=1); squared norms from the MXU feed ---
    norms = jnp.sqrt(jnp.sum(x_p * x_p, axis=1, keepdims=True))
    xn = x_p / jnp.maximum(norms, 1e-12)            # padded rows stay exactly 0
    xn_mx = xn.astype(matmul_dtype)
    sq = jnp.sum(jnp.square(xn_mx.astype(jnp.float32)), axis=1, keepdims=True)

    lab_r = jnp.full((Np, 1), _ROW_PAD, jnp.int32).at[:N, 0].set(lab_s)
    lab_c = jnp.full((1, Np), _COL_PAD, jnp.int32).at[0, :N].set(lab_s)
    idx = jnp.arange(Np, dtype=jnp.int32)
    idx_r = idx.reshape(Np, 1)
    idx_c = idx.reshape(1, Np)
    sq_r = sq
    sq_c = sq.reshape(1, Np)

    # --- per-block label ranges for tile skipping (padded rows get a huge
    #     label; their sentinel labels still never match anything) -----------
    lab_range = jnp.full((Np,), _RANGE_PAD, jnp.int32).at[:N].set(lab_s)
    blk = lab_range.reshape(gi, t)
    bmin = blk.min(axis=1).astype(jnp.int32)
    bmax = blk.max(axis=1).astype(jnp.int32)

    # --- upper-triangular tile-pair list (diagonal tiles first), assigned
    #     round-robin to cores so the always-live diagonal tiles balance -----
    pairs = [(i, i) for i in range(gi)] + \
            [(i, j) for i in range(gi) for j in range(i + 1, gi)]
    npairs = len(pairs)
    npp = -(-npairs // num_cores)                      # pairs per core (ceil)
    ti_h = np.zeros((num_cores * npp,), np.int32)
    tj_h = np.zeros((num_cores * npp,), np.int32)
    tw_h = np.zeros((num_cores * npp,), np.int32)      # weight 0 = padded/skip
    for k, (i, j) in enumerate(pairs):
        c, p = k % num_cores, k // num_cores
        ti_h[c * npp + p] = i
        tj_h[c * npp + p] = j
        tw_h[c * npp + p] = 1 if i == j else 2
    ti = jnp.asarray(ti_h)
    tj = jnp.asarray(tj_h)
    tw = jnp.asarray(tw_h)

    def row_map(c, p, ti_s, tj_s, tw_s, bmin_s, bmax_s):
        return (ti_s[c * npp + p], 0)

    def col_map(c, p, ti_s, tj_s, tw_s, bmin_s, bmax_s):
        return (tj_s[c * npp + p], 0)

    def col_map_t(c, p, ti_s, tj_s, tw_s, bmin_s, bmax_s):
        return (0, tj_s[c * npp + p])

    def out_map(c, p, ti_s, tj_s, tw_s, bmin_s, bmax_s):
        return (c, 0, 0)

    grid_spec = pltpu.PrefetchScalarGridSpec(
        num_scalar_prefetch=5,
        grid=(num_cores, npp),
        in_specs=[
            pl.BlockSpec((t, Dp), row_map),    # row-block embeddings
            pl.BlockSpec((t, Dp), col_map),    # col-block embeddings
            pl.BlockSpec((t, 1), row_map),     # row squared norms
            pl.BlockSpec((1, t), col_map_t),   # col squared norms
            pl.BlockSpec((t, 1), row_map),     # row labels
            pl.BlockSpec((1, t), col_map_t),   # col labels
            pl.BlockSpec((t, 1), row_map),     # row global indices
            pl.BlockSpec((1, t), col_map_t),   # col global indices
        ],
        out_specs=pl.BlockSpec((1, 8, 128), out_map),
    )

    # tile=512 fits comfortably in the default scoped VMEM on all generations;
    # for tile>=1024 pass vmem_limit_bytes (e.g. 96<<20 on v5e/v6e; keep
    # tile<=768 or limit<=48<<20 on v7x which has 64 MiB physical VMEM).
    cp_kwargs = dict(dimension_semantics=("parallel", "arbitrary"))
    if vmem_limit_bytes is not None:
        cp_kwargs["vmem_limit_bytes"] = int(vmem_limit_bytes)

    partials = pl.pallas_call(
        ssl_pairwise_kernel,
        out_shape=jax.ShapeDtypeStruct((num_cores, 8, 128), jnp.float32),
        grid_spec=grid_spec,
        compiler_params=pltpu.CompilerParams(**cp_kwargs),
    )(ti, tj, tw, bmin, bmax,
      xn_mx, xn_mx, sq_r, sq_c, lab_r, lab_c, idx_r, idx_c)

    masked_sum = jnp.sum(partials)
    return masked_sum / num_unique.astype(jnp.float32)


def _reference_loss(emb, labels):
    """Direct NumPy port of the PyTorch forward (per-cluster loop)."""
    emb = np.asarray(emb, dtype=np.float64)
    labels = np.asarray(labels)
    uniq = np.unique(labels)
    loss = 0.0
    for lbl in uniq:
        idx = np.where(labels == lbl)[0]
        if len(idx) > 1:
            ce = emb[idx]
            n = np.maximum(np.linalg.norm(ce, axis=1, keepdims=True), 1e-12)
            ce = ce / n
            sqn = (ce * ce).sum(axis=1)
            d2 = np.maximum(sqn[:, None] + sqn[None, :] - 2.0 * (ce @ ce.T), 0.0)
            loss += np.sqrt(d2).sum()
    return loss / len(uniq)


if __name__ == "__main__":
    key = jax.random.PRNGKey(0)
    k1, k2, k3 = jax.random.split(key, 3)

    # TODO(synk): the GAT / LSTM / HDBSCAN feature pipeline upstream of the
    # loss is out of scope; embeddings + labels are synthesized directly.

    # Test 1: N=200, D=72 (node feats + GAT(8) + LSTM(64)-ish width), random
    # HDBSCAN-style labels including -1 noise.  tile=128 -> 2x2 block grid,
    # 3 triangular tile pairs split over 2 cores (exercises the 2x weighting,
    # row/feature padding and the padded weight-0 pair skip).
    N, D = 200, 72
    embeddings = jax.random.normal(k1, (N, D), dtype=jnp.float32)
    cluster_labels = jax.random.randint(k2, (N,), -1, 4, dtype=jnp.int32)

    loss_f32 = jax.block_until_ready(
        self_supervised_loss(embeddings, cluster_labels, tile=128))
    loss_bf16 = jax.block_until_ready(
        self_supervised_loss(embeddings, cluster_labels, tile=128,
                             matmul_dtype=jnp.bfloat16))

    ref = _reference_loss(np.asarray(embeddings), np.asarray(cluster_labels))
    assert np.allclose(float(loss_f32), ref, rtol=1e-4, atol=1e-4), (float(loss_f32), ref)
    assert np.allclose(float(loss_bf16), ref, rtol=3e-3, atol=3e-3), (float(loss_bf16), ref)

    # Test 2: perfectly clustered labels (4 clusters of 64) so the sorted
    # block ranges do not overlap across the block boundary -> exercises the
    # label-range tile-skipping path.
    N2 = 256
    embeddings2 = jax.random.normal(k3, (N2, D), dtype=jnp.float32)
    cluster_labels2 = jnp.asarray(np.repeat(np.arange(-1, 3), 64).astype(np.int32))

    loss2 = jax.block_until_ready(
        self_supervised_loss(embeddings2, cluster_labels2, tile=128))
    ref2 = _reference_loss(np.asarray(embeddings2), np.asarray(cluster_labels2))
    assert np.allclose(float(loss2), ref2, rtol=1e-4, atol=1e-4), (float(loss2), ref2)

    print("KERNEL_OK")
</pallas_src>

<mosaic_0001>
module attributes {stable_mosaic.version = 11 : i64} {
  func.func @ssl_pairwise_kernel(%arg0: i32, %arg1: i32, %arg2: memref<4xi32, #tpu.memory_space<smem>>, %arg3: memref<4xi32, #tpu.memory_space<smem>>, %arg4: memref<4xi32, #tpu.memory_space<smem>>, %arg5: memref<2xi32, #tpu.memory_space<smem>>, %arg6: memref<2xi32, #tpu.memory_space<smem>>, %arg7: memref<128x128xf32, #tpu.memory_space<vmem>>, %arg8: memref<128x128xf32, #tpu.memory_space<vmem>>, %arg9: memref<128x1xf32, #tpu.memory_space<vmem>>, %arg10: memref<1x128xf32, #tpu.memory_space<vmem>>, %arg11: memref<128x1xi32, #tpu.memory_space<vmem>>, %arg12: memref<1x128xi32, #tpu.memory_space<vmem>>, %arg13: memref<128x1xi32, #tpu.memory_space<vmem>>, %arg14: memref<1x128xi32, #tpu.memory_space<vmem>>, %arg15: memref<1x8x128xf32, #tpu.memory_space<vmem>>) attributes {dimension_semantics = [#tpu.dimension_semantics<parallel>, #tpu.dimension_semantics<arbitrary>], iteration_bounds = array<i64: 2, 2>, scalar_prefetch = 5 : i64, scratch_operands = 0 : i64, tpu.core_type = #tpu.core_type<tc>, window_params = [{transform_indices = @transform_0, window_bounds = array<i64: 128, 128>}, {transform_indices = @transform_1, window_bounds = array<i64: 128, 128>}, {transform_indices = @transform_2, window_bounds = array<i64: 128, 1>}, {transform_indices = @transform_3, window_bounds = array<i64: 1, 128>}, {transform_indices = @transform_4, window_bounds = array<i64: 128, 1>}, {transform_indices = @transform_5, window_bounds = array<i64: 1, 128>}, {transform_indices = @transform_6, window_bounds = array<i64: 128, 1>}, {transform_indices = @transform_7, window_bounds = array<i64: 1, 128>}, {transform_indices = @transform_8, window_bounds = array<i64: 1, 8, 128>}]} {
    %c0_i32 = arith.constant 0 : i32
    %0 = arith.cmpi eq, %arg1, %c0_i32 : i32
    %1 = arith.extui %0 : i1 to i32
    %c0_i32_0 = arith.constant 0 : i32
    %2 = arith.cmpi ne, %1, %c0_i32_0 : i32
    scf.if %2 {
      %cst = arith.constant 0.000000e+00 : f32
      %26 = vector.broadcast %cst : f32 to vector<1x8x128xf32>
      %c0 = arith.constant 0 : index
      %c0_3 = arith.constant 0 : index
      %c0_4 = arith.constant 0 : index
      %27 = vector.load %arg15[%c0, %c0_3, %c0_4] : memref<1x8x128xf32, #tpu.memory_space<vmem>>, vector<1x8x128xf32>
      tpu.vector_store %arg15[%c0, %c0_3, %c0_4], %26 {strides = array<i32>} : memref<1x8x128xf32, #tpu.memory_space<vmem>>, vector<1x8x128xf32>,
    } else {
    }
    %c2_i32 = arith.constant 2 : i32
    %3 = arith.muli %arg0, %c2_i32 : i32
    %4 = arith.addi %3, %arg1 : i32
    %5 = arith.index_cast %4 : i32 to index
    %6 = memref.load %arg2[%5] : memref<4xi32, #tpu.memory_space<smem>>
    %7 = arith.index_cast %4 : i32 to index
    %8 = memref.load %arg3[%7] : memref<4xi32, #tpu.memory_space<smem>>
    %9 = arith.index_cast %4 : i32 to index
    %10 = memref.load %arg4[%9] : memref<4xi32, #tpu.memory_space<smem>>
    %11 = arith.index_cast %6 : i32 to index
    %12 = memref.load %arg6[%11] : memref<2xi32, #tpu.memory_space<smem>>
    %13 = arith.index_cast %8 : i32 to index
    %14 = memref.load %arg5[%13] : memref<2xi32, #tpu.memory_space<smem>>
    %15 = arith.cmpi sge, %12, %14 : i32
    %16 = arith.index_cast %8 : i32 to index
    %17 = memref.load %arg6[%16] : memref<2xi32, #tpu.memory_space<smem>>
    %18 = arith.index_cast %6 : i32 to index
    %19 = memref.load %arg5[%18] : memref<2xi32, #tpu.memory_space<smem>>
    %20 = arith.cmpi sge, %17, %19 : i32
    %21 = arith.andi %15, %20 : i1
    %c0_i32_1 = arith.constant 0 : i32
    %22 = arith.cmpi sgt, %10, %c0_i32_1 : i32
    %23 = arith.andi %21, %22 : i1
    %24 = arith.extui %23 : i1 to i32
    %c0_i32_2 = arith.constant 0 : i32
    %25 = arith.cmpi ne, %24, %c0_i32_2 : i32
    scf.if %25 {
      %c0 = arith.constant 0 : index
      %c0_3 = arith.constant 0 : index
      %26 = vector.load %arg7[%c0, %c0_3] : memref<128x128xf32, #tpu.memory_space<vmem>>, vector<128x128xf32>
      %c0_4 = arith.constant 0 : index
      %c0_5 = arith.constant 0 : index
      %27 = vector.load %arg8[%c0_4, %c0_5] : memref<128x128xf32, #tpu.memory_space<vmem>>, vector<128x128xf32>
      %cst = arith.constant dense<0.000000e+00> : vector<128x128xf32>
      %28 = tpu.matmul %26, %27, %cst {dimension_numbers = #tpu.dot_dimension_numbers<[1], [1], [0], [0], [0, 0, 1, 0], [], []>} : vector<128x128xf32>, vector<128x128xf32>, vector<128x128xf32> -> vector<128x128xf32>
      %c0_6 = arith.constant 0 : index
      %c0_7 = arith.constant 0 : index
      %29 = vector.load %arg10[%c0_6, %c0_7] : memref<1x128xf32, #tpu.memory_space<vmem>>, vector<1x128xf32>
      %cst_8 = arith.constant 2.000000e+00 : f32
      %30 = vector.broadcast %cst_8 : f32 to vector<128x128xf32>
      %31 = arith.mulf %30, %28 : vector<128x128xf32>
      %32 = vector.broadcast %29 : vector<1x128xf32> to vector<128x128xf32>
      %33 = arith.subf %32, %31 : vector<128x128xf32>
      %c0_9 = arith.constant 0 : index
      %c0_10 = arith.constant 0 : index
      %34 = vector.load %arg9[%c0_9, %c0_10] : memref<128x1xf32, #tpu.memory_space<vmem>>, vector<128x1xf32>
      %35 = vector.broadcast %34 : vector<128x1xf32> to vector<128x128xf32>
      %36 = arith.addf %33, %35 : vector<128x128xf32>
      %cst_11 = arith.constant 0.000000e+00 : f32
      %37 = vector.broadcast %cst_11 : f32 to vector<128x128xf32>
      %38 = arith.maximumf %36, %37 : vector<128x128xf32>
      %39 = math.sqrt %38 : vector<128x128xf32>
      %c0_12 = arith.constant 0 : index
      %c0_13 = arith.constant 0 : index
      %40 = vector.load %arg11[%c0_12, %c0_13] : memref<128x1xi32, #tpu.memory_space<vmem>>, vector<128x1xi32>
      %c0_14 = arith.constant 0 : index
      %c0_15 = arith.constant 0 : index
      %41 = vector.load %arg12[%c0_14, %c0_15] : memref<1x128xi32, #tpu.memory_space<vmem>>, vector<1x128xi32>
      %42 = vector.broadcast %40 : vector<128x1xi32> to vector<128x128xi32>
      %43 = vector.broadcast %41 : vector<1x128xi32> to vector<128x128xi32>
      %44 = arith.cmpi eq, %42, %43 : vector<128x128xi32>
      %c0_16 = arith.constant 0 : index
      %c0_17 = arith.constant 0 : index
      %45 = vector.load %arg13[%c0_16, %c0_17] : memref<128x1xi32, #tpu.memory_space<vmem>>, vector<128x1xi32>
      %c0_18 = arith.constant 0 : index
      %c0_19 = arith.constant 0 : index
      %46 = vector.load %arg14[%c0_18, %c0_19] : memref<1x128xi32, #tpu.memory_space<vmem>>, vector<1x128xi32>
      %47 = vector.broadcast %45 : vector<128x1xi32> to vector<128x128xi32>
      %48 = vector.broadcast %46 : vector<1x128xi32> to vector<128x128xi32>
      %49 = arith.cmpi ne, %47, %48 : vector<128x128xi32>
      %50 = arith.andi %44, %49 : vector<128x128xi1>
      %cst_20 = arith.constant 0.000000e+00 : f32
      %51 = vector.broadcast %cst_20 : f32 to vector<128x128xf32>
      %52 = arith.select %50, %39, %51 : vector<128x128xi1>, vector<128x128xf32>
      %53 = vector.extract_strided_slice %52 {offsets = [0, 0], sizes = [8, 128], strides = [1, 1]} : vector<128x128xf32> to vector<8x128xf32>
      %54 = vector.extract_strided_slice %52 {offsets = [8, 0], sizes = [8, 128], strides = [1, 1]} : vector<128x128xf32> to vector<8x128xf32>
      %55 = arith.addf %53, %54 : vector<8x128xf32>
      %56 = vector.extract_strided_slice %52 {offsets = [16, 0], sizes = [8, 128], strides = [1, 1]} : vector<128x128xf32> to vector<8x128xf32>
      %57 = arith.addf %55, %56 : vector<8x128xf32>
      %58 = vector.extract_strided_slice %52 {offsets = [24, 0], sizes = [8, 128], strides = [1, 1]} : vector<128x128xf32> to vector<8x128xf32>
      %59 = arith.addf %57, %58 : vector<8x128xf32>
      %60 = vector.extract_strided_slice %52 {offsets = [32, 0], sizes = [8, 128], strides = [1, 1]} : vector<128x128xf32> to vector<8x128xf32>
      %61 = arith.addf %59, %60 : vector<8x128xf32>
      %62 = vector.extract_strided_slice %52 {offsets = [40, 0], sizes = [8, 128], strides = [1, 1]} : vector<128x128xf32> to vector<8x128xf32>
      %63 = arith.addf %61, %62 : vector<8x128xf32>
      %64 = vector.extract_strided_slice %52 {offsets = [48, 0], sizes = [8, 128], strides = [1, 1]} : vector<128x128xf32> to vector<8x128xf32>
      %65 = arith.addf %63, %64 : vector<8x128xf32>
      %66 = vector.extract_strided_slice %52 {offsets = [56, 0], sizes = [8, 128], strides = [1, 1]} : vector<128x128xf32> to vector<8x128xf32>
      %67 = arith.addf %65, %66 : vector<8x128xf32>
      %68 = vector.extract_strided_slice %52 {offsets = [64, 0], sizes = [8, 128], strides = [1, 1]} : vector<128x128xf32> to vector<8x128xf32>
      %69 = arith.addf %67, %68 : vector<8x128xf32>
      %70 = vector.extract_strided_slice %52 {offsets = [72, 0], sizes = [8, 128], strides = [1, 1]} : vector<128x128xf32> to vector<8x128xf32>
      %71 = arith.addf %69, %70 : vector<8x128xf32>
      %72 = vector.extract_strided_slice %52 {offsets = [80, 0], sizes = [8, 128], strides = [1, 1]} : vector<128x128xf32> to vector<8x128xf32>
      %73 = arith.addf %71, %72 : vector<8x128xf32>
      %74 = vector.extract_strided_slice %52 {offsets = [88, 0], sizes = [8, 128], strides = [1, 1]} : vector<128x128xf32> to vector<8x128xf32>
      %75 = arith.addf %73, %74 : vector<8x128xf32>
      %76 = vector.extract_strided_slice %52 {offsets = [96, 0], sizes = [8, 128], strides = [1, 1]} : vector<128x128xf32> to vector<8x128xf32>
      %77 = arith.addf %75, %76 : vector<8x128xf32>
      %78 = vector.extract_strided_slice %52 {offsets = [104, 0], sizes = [8, 128], strides = [1, 1]} : vector<128x128xf32> to vector<8x128xf32>
      %79 = arith.addf %77, %78 : vector<8x128xf32>
      %80 = vector.extract_strided_slice %52 {offsets = [112, 0], sizes = [8, 128], strides = [1, 1]} : vector<128x128xf32> to vector<8x128xf32>
      %81 = arith.addf %79, %80 : vector<8x128xf32>
      %82 = vector.extract_strided_slice %52 {offsets = [120, 0], sizes = [8, 128], strides = [1, 1]} : vector<128x128xf32> to vector<8x128xf32>
      %83 = arith.addf %81, %82 : vector<8x128xf32>
      %c0_21 = arith.constant 0 : index
      %c0_22 = arith.constant 0 : index
      %c0_23 = arith.constant 0 : index
      %84 = vector.load %arg15[%c0_21, %c0_22, %c0_23] : memref<1x8x128xf32, #tpu.memory_space<vmem>>, vector<1x8x128xf32>
      %85 = vector.shape_cast %84 : vector<1x8x128xf32> to vector<8x128xf32>
      %86 = arith.sitofp %10 : i32 to f32
      %87 = vector.broadcast %86 : f32 to vector<8x128xf32>
      %88 = arith.mulf %87, %83 : vector<8x128xf32>
      %89 = arith.addf %85, %88 : vector<8x128xf32>
      %c0_24 = arith.constant 0 : index
      %c0_25 = arith.constant 0 : index
      %c0_26 = arith.constant 0 : index
      %90 = vector.load %arg15[%c0_24, %c0_25, %c0_26] : memref<1x8x128xf32, #tpu.memory_space<vmem>>, vector<1x8x128xf32>
      %91 = vector.shape_cast %90 : vector<1x8x128xf32> to vector<8x128xf32>
      %92 = vector.shape_cast %89 : vector<8x128xf32> to vector<1x8x128xf32>
      tpu.vector_store %arg15[%c0_24, %c0_25, %c0_26], %92 {strides = array<i32>} : memref<1x8x128xf32, #tpu.memory_space<vmem>>, vector<1x8x128xf32>,
    } else {
    }
    return
  }
  func.func @transform_0(%arg0: i32, %arg1: i32, %arg2: memref<4xi32, #tpu.memory_space<smem>>, %arg3: memref<4xi32, #tpu.memory_space<smem>>, %arg4: memref<4xi32, #tpu.memory_space<smem>>, %arg5: memref<2xi32, #tpu.memory_space<smem>>, %arg6: memref<2xi32, #tpu.memory_space<smem>>) -> (i32, i32) {
    %c2_i32 = arith.constant 2 : i32
    %0 = arith.muli %arg0, %c2_i32 : i32
    %1 = arith.addi %0, %arg1 : i32
    %2 = arith.index_cast %1 : i32 to index
    %3 = memref.load %arg2[%2] : memref<4xi32, #tpu.memory_space<smem>>
    %c0_i32 = arith.constant 0 : i32
    %c0_i32_0 = arith.constant 0 : i32
    return %3, %c0_i32 : i32, i32
  }
  func.func @transform_1(%arg0: i32, %arg1: i32, %arg2: memref<4xi32, #tpu.memory_space<smem>>, %arg3: memref<4xi32, #tpu.memory_space<smem>>, %arg4: memref<4xi32, #tpu.memory_space<smem>>, %arg5: memref<2xi32, #tpu.memory_space<smem>>, %arg6: memref<2xi32, #tpu.memory_space<smem>>) -> (i32, i32) {
    %c2_i32 = arith.constant 2 : i32
    %0 = arith.muli %arg0, %c2_i32 : i32
    %1 = arith.addi %0, %arg1 : i32
    %2 = arith.index_cast %1 : i32 to index
    %3 = memref.load %arg3[%2] : memref<4xi32, #tpu.memory_space<smem>>
    %c0_i32 = arith.constant 0 : i32
    %c0_i32_0 = arith.constant 0 : i32
    return %3, %c0_i32 : i32, i32
  }
  func.func @transform_2(%arg0: i32, %arg1: i32, %arg2: memref<4xi32, #tpu.memory_space<smem>>, %arg3: memref<4xi32, #tpu.memory_space<smem>>, %arg4: memref<4xi32, #tpu.memory_space<smem>>, %arg5: memref<2xi32, #tpu.memory_space<smem>>, %arg6: memref<2xi32, #tpu.memory_space<smem>>) -> (i32, i32) {
    %c2_i32 = arith.constant 2 : i32
    %0 = arith.muli %arg0, %c2_i32 : i32
    %1 = arith.addi %0, %arg1 : i32
    %2 = arith.index_cast %1 : i32 to index
    %3 = memref.load %arg2[%2] : memref<4xi32, #tpu.memory_space<smem>>
    %c0_i32 = arith.constant 0 : i32
    %c0_i32_0 = arith.constant 0 : i32
    return %3, %c0_i32 : i32, i32
  }
  func.func @transform_3(%arg0: i32, %arg1: i32, %arg2: memref<4xi32, #tpu.memory_space<smem>>, %arg3: memref<4xi32, #tpu.memory_space<smem>>, %arg4: memref<4xi32, #tpu.memory_space<smem>>, %arg5: memref<2xi32, #tpu.memory_space<smem>>, %arg6: memref<2xi32, #tpu.memory_space<smem>>) -> (i32, i32) {
    %c2_i32 = arith.constant 2 : i32
    %0 = arith.muli %arg0, %c2_i32 : i32
    %1 = arith.addi %0, %arg1 : i32
    %2 = arith.index_cast %1 : i32 to index
    %3 = memref.load %arg3[%2] : memref<4xi32, #tpu.memory_space<smem>>
    %c0_i32 = arith.constant 0 : i32
    %c0_i32_0 = arith.constant 0 : i32
    return %c0_i32, %3 : i32, i32
  }
  func.func @transform_4(%arg0: i32, %arg1: i32, %arg2: memref<4xi32, #tpu.memory_space<smem>>, %arg3: memref<4xi32, #tpu.memory_space<smem>>, %arg4: memref<4xi32, #tpu.memory_space<smem>>, %arg5: memref<2xi32, #tpu.memory_space<smem>>, %arg6: memref<2xi32, #tpu.memory_space<smem>>) -> (i32, i32) {
    %c2_i32 = arith.constant 2 : i32
    %0 = arith.muli %arg0, %c2_i32 : i32
    %1 = arith.addi %0, %arg1 : i32
    %2 = arith.index_cast %1 : i32 to index
    %3 = memref.load %arg2[%2] : memref<4xi32, #tpu.memory_space<smem>>
    %c0_i32 = arith.constant 0 : i32
    %c0_i32_0 = arith.constant 0 : i32
    return %3, %c0_i32 : i32, i32
  }
  func.func @transform_5(%arg0: i32, %arg1: i32, %arg2: memref<4xi32, #tpu.memory_space<smem>>, %arg3: memref<4xi32, #tpu.memory_space<smem>>, %arg4: memref<4xi32, #tpu.memory_space<smem>>, %arg5: memref<2xi32, #tpu.memory_space<smem>>, %arg6: memref<2xi32, #tpu.memory_space<smem>>) -> (i32, i32) {
    %c2_i32 = arith.constant 2 : i32
    %0 = arith.muli %arg0, %c2_i32 : i32
    %1 = arith.addi %0, %arg1 : i32
    %2 = arith.index_cast %1 : i32 to index
    %3 = memref.load %arg3[%2] : memref<4xi32, #tpu.memory_space<smem>>
    %c0_i32 = arith.constant 0 : i32
    %c0_i32_0 = arith.constant 0 : i32
    return %c0_i32, %3 : i32, i32
  }
  func.func @transform_6(%arg0: i32, %arg1: i32, %arg2: memref<4xi32, #tpu.memory_space<smem>>, %arg3: memref<4xi32, #tpu.memory_space<smem>>, %arg4: memref<4xi32, #tpu.memory_space<smem>>, %arg5: memref<2xi32, #tpu.memory_space<smem>>, %arg6: memref<2xi32, #tpu.memory_space<smem>>) -> (i32, i32) {
    %c2_i32 = arith.constant 2 : i32
    %0 = arith.muli %arg0, %c2_i32 : i32
    %1 = arith.addi %0, %arg1 : i32
    %2 = arith.index_cast %1 : i32 to index
    %3 = memref.load %arg2[%2] : memref<4xi32, #tpu.memory_space<smem>>
    %c0_i32 = arith.constant 0 : i32
    %c0_i32_0 = arith.constant 0 : i32
    return %3, %c0_i32 : i32, i32
  }
  func.func @transform_7(%arg0: i32, %arg1: i32, %arg2: memref<4xi32, #tpu.memory_space<smem>>, %arg3: memref<4xi32, #tpu.memory_space<smem>>, %arg4: memref<4xi32, #tpu.memory_space<smem>>, %arg5: memref<2xi32, #tpu.memory_space<smem>>, %arg6: memref<2xi32, #tpu.memory_space<smem>>) -> (i32, i32) {
    %c2_i32 = arith.constant 2 : i32
    %0 = arith.muli %arg0, %c2_i32 : i32
    %1 = arith.addi %0, %arg1 : i32
    %2 = arith.index_cast %1 : i32 to index
    %3 = memref.load %arg3[%2] : memref<4xi32, #tpu.memory_space<smem>>
    %c0_i32 = arith.constant 0 : i32
    %c0_i32_0 = arith.constant 0 : i32
    return %c0_i32, %3 : i32, i32
  }
  func.func @transform_8(%arg0: i32, %arg1: i32, %arg2: memref<4xi32, #tpu.memory_space<smem>>, %arg3: memref<4xi32, #tpu.memory_space<smem>>, %arg4: memref<4xi32, #tpu.memory_space<smem>>, %arg5: memref<2xi32, #tpu.memory_space<smem>>, %arg6: memref<2xi32, #tpu.memory_space<smem>>) -> (i32, i32, i32) {
    %c0_i32 = arith.constant 0 : i32
    %c0_i32_0 = arith.constant 0 : i32
    %c0_i32_1 = arith.constant 0 : i32
    return %arg0, %c0_i32, %c0_i32_0 : i32, i32, i32
  }
}

</mosaic_0001>

<llo_original>
// kernel: tpu_custom_call.1
$region0: #{tpu_custom_call.1}
  #allocation0 [shape = 'u32[]', space=smem, size = 0x4, offset = 0x4, fixed_abs, tag = 'smem constant byte address 0x4 - core index']
  #allocation1 [shape = 'u32[72,128]{1,0:T(1,128)}', space=vmem, size = 0x9000, scoped, tag = 'internal scratch']
  #allocation2 [shape = 's32[1]{0}', space=sflag, size = 0x4, scoped, tag = 'scoped memory for tpu_custom_call.1']
  #allocation3 [shape = 'u8[512]{0}', space=smem, size = 0x200, scoped, tag = 'prefetched SMEM operand 0']
  #allocation4 [shape = 'u8[512]{0}', space=smem, size = 0x200, scoped, tag = 'prefetched SMEM operand 1']
  #allocation5 [shape = 'u8[512]{0}', space=smem, size = 0x200, scoped, tag = 'prefetched SMEM operand 2']
  #allocation6 [shape = 'u8[512]{0}', space=smem, size = 0x200, scoped, tag = 'prefetched SMEM operand 3']
  #allocation7 [shape = 'u8[512]{0}', space=smem, size = 0x200, scoped, tag = 'prefetched SMEM operand 4']
  %s0 = inlined_call_operand.vmem [shape: s32[4], index: 0, kind: input, shape index: {}]
  %s1 = inlined_call_operand.vmem [shape: s32[4], index: 1, kind: input, shape index: {}]
  %s2 = inlined_call_operand.vmem [shape: s32[4], index: 2, kind: input, shape index: {}]
  %s3 = inlined_call_operand.vmem [shape: s32[2], index: 3, kind: input, shape index: {}]
  %s4 = inlined_call_operand.vmem [shape: s32[2], index: 4, kind: input, shape index: {}]
  %s5 = inlined_call_operand.vmem [shape: f32[256,128], index: 5, kind: input, shape index: {}]
  %s6 = inlined_call_operand.vmem [shape: f32[256,128], index: 6, kind: input, shape index: {}]
  %s7 = inlined_call_operand.vmem [shape: f32[256,1], index: 7, kind: input, shape index: {}]
  %s8 = inlined_call_operand.vmem [shape: f32[1,256], index: 8, kind: input, shape index: {}]
  %s9 = inlined_call_operand.vmem [shape: s32[256,1], index: 9, kind: input, shape index: {}]
  %s10 = inlined_call_operand.vmem [shape: s32[1,256], index: 10, kind: input, shape index: {}]
  %s11 = inlined_call_operand.vmem [shape: s32[256,1], index: 11, kind: input, shape index: {}]
  %s12 = inlined_call_operand.vmem [shape: s32[1,256], index: 12, kind: input, shape index: {}]
  %s13 = inlined_call_operand.hbm [shape: f32[2,8,128], index: 13, kind: output, shape index: {}]
  %s14 = sld [smem:[#allocation0]]
  $region73: #{tpu_custom_call.1} parent=0
    _
  %s16 = ssub.s32 1, %s14
  %s17 = scalar_select 0, %s16, %s14
  %s19 = sshll.u32 %s0, 4
  %s20 = int_to_ptr.vmem [resolvable:$true] %s19
  %22 = dma.vmem_to_smem %s20, 16, [#allocation3], [#allocation2]
  %s24 = sshll.u32 %s1, 4
  %s25 = int_to_ptr.vmem [resolvable:$true] %s24
  %27 = dma.vmem_to_smem %s25, 16, [#allocation4], [#allocation2]
  %s29 = sshll.u32 %s2, 4
  %s30 = int_to_ptr.vmem [resolvable:$true] %s29
  %32 = dma.vmem_to_smem %s30, 16, [#allocation5], [#allocation2]
  %s34 = sshll.u32 %s3, 4
  %s35 = int_to_ptr.vmem [resolvable:$true] %s34
  %37 = dma.vmem_to_smem %s35, 16, [#allocation6], [#allocation2]
  %s39 = sshll.u32 %s4, 4
  %s40 = int_to_ptr.vmem [resolvable:$true] %s39
  %42 = dma.vmem_to_smem %s40, 16, [#allocation7], [#allocation2]
  %44 = dma.done [#allocation2], 80
  %45 = sfence
  $region1: #{tpu_custom_call.1} parent=0
    #allocation8 [shape = 'u8[8192]{0}', space=vmem, size = 0x2000, scoped, tag = 'output window, operand 0']
    #allocation9 [shape = 's32[2]{0}', space=sflag, size = 0x8, scoped, tag = 'scoped memory for tpu_custom_call.1']
    %46 = vsyncpa [#allocation9], 0
    %s47 = scalar_lea.sflag [#allocation9], 1
    %48 = vsyncpa %s47, 0
    loop: start=0, step=1, limit=6
    $region2: #{tpu_custom_call.1} parent=1 // loop_pre_header
      _
    $region3: #{tpu_custom_call.1} parent=1 // loop_header
      %s50 = sphi 0, %s54
      %p51 = scmp.ge.s32.totalorder %s50, 6
      %s57 = sphi 0, %s69
      %s58 = sphi 0, %s65
      %s59 = sphi 0, %s57
      %s60 = sphi 0, %s58
      %s61 = sphi 0, %s59
      %s62 = sphi 0, %s60
      %s78 = sphi 0, %s80
      %s81 = sphi 0, %s78
      %s82 = sphi 0, %s81
      %s98 = sphi 0, %s82
      %s110 = sphi 0, %s112
      %s113 = sphi 0, %s110
      %s114 = sphi 0, %s113
      %s130 = sphi 0, %s114
      %s142 = sphi 0, %s144
      %s145 = sphi 0, %s142
      %s146 = sphi 0, %s145
      %s162 = sphi 0, %s146
      %s174 = sphi 0, %s176
      %s177 = sphi 0, %s174
      %s178 = sphi 0, %s177
      %s194 = sphi 0, %s178
      %s206 = sphi 0, %s208
      %s209 = sphi 0, %s206
      %s210 = sphi 0, %s209
      %s226 = sphi 0, %s210
      %s238 = sphi 0, %s240
      %s241 = sphi 0, %s238
      %s242 = sphi 0, %s241
      %s258 = sphi 0, %s242
      %s270 = sphi 0, %s272
      %s273 = sphi 0, %s270
      %s274 = sphi 0, %s273
      %s290 = sphi 0, %s274
      %s302 = sphi 0, %s304
      %s305 = sphi 0, %s302
      %s306 = sphi 0, %s305
      %s322 = sphi 0, %s306
      %s328 = sphi 0, %s330
      %s331 = sphi 0, %s328
      %s332 = sphi 0, %s331
      %s348 = sphi 0, %s332
    $region4: #{tpu_custom_call.1} parent=1 // loop_header_branch
      %53 = sbr.rel (%p51) target = $region8
    $region5: #{tpu_custom_call.1} parent=1 // loop_body
      %s55 = ssub.s32 %s50, 1
      %s56 = ssub.s32 %s50, 2
      %s63 = sadd.s32 1, %s58
      %p64 = scmp.ge.s32.totalorder %s63, 2
      %s65 = scalar_select %p64, 0, %s63
      %s66 = sadd.s32 1, %s57
      %s67 = scalar_select %p64, %s66, %s57
      %p68 = scmp.ge.s32.totalorder %s67, 2
      %s69 = scalar_select %p68, 0, %s67
      %s70 = smul.u32 %s57, 2
      %s71 = sadd.s32 %s70, %s58
      %s72 = sld [smem:[#allocation3 + %s71]]
      %s73 = smul.u32 %s69, 2
      %s74 = sadd.s32 %s73, %s65
      %s75 = sld [smem:[#allocation3 + %s74]]
      %s76 = ssub.s32 %s72, %s75
      %p77 = scmp.eq.s32.totalorder %s76, 0
      %s79 = sadd.s32 %s78, 1
      %s80 = scalar_select %p77, %s78, %s79
      %p83 = pneg %p77
      %p84 = scmp.eq.s32.totalorder %s50, 3
      %p85 = por %p83, %p84
      %p86 = scmp.ne.s32.totalorder %s78, %s81
      %p87 = scmp.eq.s32.totalorder %s50, 0
      %p88 = por %p86, %p87
      %p89 = scmp.ne.s32.totalorder %s78, %s81
      %p90 = scmp.eq.s32.totalorder %s55, 3
      %p91 = por %p89, %p90
      %p92 = scmp.ne.s32.totalorder %s81, %s82
      %p93 = scmp.eq.s32.totalorder %s55, 0
      %p94 = por %p92, %p93
      %p95 = scmp.ne.s32.totalorder %s81, %s82
      %p96 = scmp.eq.s32.totalorder %s56, 3
      %p97 = por %p95, %p96
      %p99 = scmp.ne.s32.totalorder %s82, %s98
      %p100 = scmp.eq.s32.totalorder %s56, 0
      %p101 = por %p99, %p100
      %s102 = smul.u32 %s57, 2
      %s103 = sadd.s32 %s102, %s58
      %s104 = sld [smem:[#allocation4 + %s103]]
      %s105 = smul.u32 %s69, 2
      %s106 = sadd.s32 %s105, %s65
      %s107 = sld [smem:[#allocation4 + %s106]]
      %s108 = ssub.s32 %s104, %s107
      %p109 = scmp.eq.s32.totalorder %s108, 0
      %s111 = sadd.s32 %s110, 1
      %s112 = scalar_select %p109, %s110, %s111
      %p115 = pneg %p109
      %p116 = scmp.eq.s32.totalorder %s50, 3
      %p117 = por %p115, %p116
      %p118 = scmp.ne.s32.totalorder %s110, %s113
      %p119 = scmp.eq.s32.totalorder %s50, 0
      %p120 = por %p118, %p119
      %p121 = scmp.ne.s32.totalorder %s110, %s113
      %p122 = scmp.eq.s32.totalorder %s55, 3
      %p123 = por %p121, %p122
      %p124 = scmp.ne.s32.totalorder %s113, %s114
      %p125 = scmp.eq.s32.totalorder %s55, 0
      %p126 = por %p124, %p125
      %p127 = scmp.ne.s32.totalorder %s113, %s114
      %p128 = scmp.eq.s32.totalorder %s56, 3
      %p129 = por %p127, %p128
      %p131 = scmp.ne.s32.totalorder %s114, %s130
      %p132 = scmp.eq.s32.totalorder %s56, 0
      %p133 = por %p131, %p132
      %s134 = smul.u32 %s57, 2
      %s135 = sadd.s32 %s134, %s58
      %s136 = sld [smem:[#allocation3 + %s135]]
      %s137 = smul.u32 %s69, 2
      %s138 = sadd.s32 %s137, %s65
      %s139 = sld [smem:[#allocation3 + %s138]]
      %s140 = ssub.s32 %s136, %s139
      %p141 = scmp.eq.s32.totalorder %s140, 0
      %s143 = sadd.s32 %s142, 1
      %s144 = scalar_select %p141, %s142, %s143
      %p147 = pneg %p141
      %p148 = scmp.eq.s32.totalorder %s50, 3
      %p149 = por %p147, %p148
      %p150 = scmp.ne.s32.totalorder %s142, %s145
      %p151 = scmp.eq.s32.totalorder %s50, 0
      %p152 = por %p150, %p151
      %p153 = scmp.ne.s32.totalorder %s142, %s145
      %p154 = scmp.eq.s32.totalorder %s55, 3
      %p155 = por %p153, %p154
      %p156 = scmp.ne.s32.totalorder %s145, %s146
      %p157 = scmp.eq.s32.totalorder %s55, 0
      %p158 = por %p156, %p157
      %p159 = scmp.ne.s32.totalorder %s145, %s146
      %p160 = scmp.eq.s32.totalorder %s56, 3
      %p161 = por %p159, %p160
      %p163 = scmp.ne.s32.totalorder %s146, %s162
      %p164 = scmp.eq.s32.totalorder %s56, 0
      %p165 = por %p163, %p164
      %s166 = smul.u32 %s57, 2
      %s167 = sadd.s32 %s166, %s58
      %s168 = sld [smem:[#allocation4 + %s167]]
      %s169 = smul.u32 %s69, 2
      %s170 = sadd.s32 %s169, %s65
      %s171 = sld [smem:[#allocation4 + %s170]]
      %s172 = ssub.s32 %s168, %s171
      %p173 = scmp.eq.s32.totalorder %s172, 0
      %s175 = sadd.s32 %s174, 1
      %s176 = scalar_select %p173, %s174, %s175
      %p179 = pneg %p173
      %p180 = scmp.eq.s32.totalorder %s50, 3
      %p181 = por %p179, %p180
      %p182 = scmp.ne.s32.totalorder %s174, %s177
      %p183 = scmp.eq.s32.totalorder %s50, 0
      %p184 = por %p182, %p183
      %p185 = scmp.ne.s32.totalorder %s174, %s177
      %p186 = scmp.eq.s32.totalorder %s55, 3
      %p187 = por %p185, %p186
      %p188 = scmp.ne.s32.totalorder %s177, %s178
      %p189 = scmp.eq.s32.totalorder %s55, 0
      %p190 = por %p188, %p189
      %p191 = scmp.ne.s32.totalorder %s177, %s178
      %p192 = scmp.eq.s32.totalorder %s56, 3
      %p193 = por %p191, %p192
      %p195 = scmp.ne.s32.totalorder %s178, %s194
      %p196 = scmp.eq.s32.totalorder %s56, 0
      %p197 = por %p195, %p196
      %s198 = smul.u32 %s57, 2
      %s199 = sadd.s32 %s198, %s58
      %s200 = sld [smem:[#allocation3 + %s199]]
      %s201 = smul.u32 %s69, 2
      %s202 = sadd.s32 %s201, %s65
      %s203 = sld [smem:[#allocation3 + %s202]]
      %s204 = ssub.s32 %s200, %s203
      %p205 = scmp.eq.s32.totalorder %s204, 0
      %s207 = sadd.s32 %s206, 1
      %s208 = scalar_select %p205, %s206, %s207
      %p211 = pneg %p205
      %p212 = scmp.eq.s32.totalorder %s50, 3
      %p213 = por %p211, %p212
      %p214 = scmp.ne.s32.totalorder %s206, %s209
      %p215 = scmp.eq.s32.totalorder %s50, 0
      %p216 = por %p214, %p215
      %p217 = scmp.ne.s32.totalorder %s206, %s209
      %p218 = scmp.eq.s32.totalorder %s55, 3
      %p219 = por %p217, %p218
      %p220 = scmp.ne.s32.totalorder %s209, %s210
      %p221 = scmp.eq.s32.totalorder %s55, 0
      %p222 = por %p220, %p221
      %p223 = scmp.ne.s32.totalorder %s209, %s210
      %p224 = scmp.eq.s32.totalorder %s56, 3
      %p225 = por %p223, %p224
      %p227 = scmp.ne.s32.totalorder %s210, %s226
      %p228 = scmp.eq.s32.totalorder %s56, 0
      %p229 = por %p227, %p228
      %s230 = smul.u32 %s57, 2
      %s231 = sadd.s32 %s230, %s58
      %s232 = sld [smem:[#allocation4 + %s231]]
      %s233 = smul.u32 %s69, 2
      %s234 = sadd.s32 %s233, %s65
      %s235 = sld [smem:[#allocation4 + %s234]]
      %s236 = ssub.s32 %s232, %s235
      %p237 = scmp.eq.s32.totalorder %s236, 0
      %s239 = sadd.s32 %s238, 1
      %s240 = scalar_select %p237, %s238, %s239
      %p243 = pneg %p237
      %p244 = scmp.eq.s32.totalorder %s50, 3
      %p245 = por %p243, %p244
      %p246 = scmp.ne.s32.totalorder %s238, %s241
      %p247 = scmp.eq.s32.totalorder %s50, 0
      %p248 = por %p246, %p247
      %p249 = scmp.ne.s32.totalorder %s238, %s241
      %p250 = scmp.eq.s32.totalorder %s55, 3
      %p251 = por %p249, %p250
      %p252 = scmp.ne.s32.totalorder %s241, %s242
      %p253 = scmp.eq.s32.totalorder %s55, 0
      %p254 = por %p252, %p253
      %p255 = scmp.ne.s32.totalorder %s241, %s242
      %p256 = scmp.eq.s32.totalorder %s56, 3
      %p257 = por %p255, %p256
      %p259 = scmp.ne.s32.totalorder %s242, %s258
      %p260 = scmp.eq.s32.totalorder %s56, 0
      %p261 = por %p259, %p260
      %s262 = smul.u32 %s57, 2
      %s263 = sadd.s32 %s262, %s58
      %s264 = sld [smem:[#allocation3 + %s263]]
      %s265 = smul.u32 %s69, 2
      %s266 = sadd.s32 %s265, %s65
      %s267 = sld [smem:[#allocation3 + %s266]]
      %s268 = ssub.s32 %s264, %s267
      %p269 = scmp.eq.s32.totalorder %s268, 0
      %s271 = sadd.s32 %s270, 1
      %s272 = scalar_select %p269, %s270, %s271
      %p275 = pneg %p269
      %p276 = scmp.eq.s32.totalorder %s50, 3
      %p277 = por %p275, %p276
      %p278 = scmp.ne.s32.totalorder %s270, %s273
      %p279 = scmp.eq.s32.totalorder %s50, 0
      %p280 = por %p278, %p279
      %p281 = scmp.ne.s32.totalorder %s270, %s273
      %p282 = scmp.eq.s32.totalorder %s55, 3
      %p283 = por %p281, %p282
      %p284 = scmp.ne.s32.totalorder %s273, %s274
      %p285 = scmp.eq.s32.totalorder %s55, 0
      %p286 = por %p284, %p285
      %p287 = scmp.ne.s32.totalorder %s273, %s274
      %p288 = scmp.eq.s32.totalorder %s56, 3
      %p289 = por %p287, %p288
      %p291 = scmp.ne.s32.totalorder %s274, %s290
      %p292 = scmp.eq.s32.totalorder %s56, 0
      %p293 = por %p291, %p292
      %s294 = smul.u32 %s57, 2
      %s295 = sadd.s32 %s294, %s58
      %s296 = sld [smem:[#allocation4 + %s295]]
      %s297 = smul.u32 %s69, 2
      %s298 = sadd.s32 %s297, %s65
      %s299 = sld [smem:[#allocation4 + %s298]]
      %s300 = ssub.s32 %s296, %s299
      %p301 = scmp.eq.s32.totalorder %s300, 0
      %s303 = sadd.s32 %s302, 1
      %s304 = scalar_select %p301, %s302, %s303
      %p307 = pneg %p301
      %p308 = scmp.eq.s32.totalorder %s50, 3
      %p309 = por %p307, %p308
      %p310 = scmp.ne.s32.totalorder %s302, %s305
      %p311 = scmp.eq.s32.totalorder %s50, 0
      %p312 = por %p310, %p311
      %p313 = scmp.ne.s32.totalorder %s302, %s305
      %p314 = scmp.eq.s32.totalorder %s55, 3
      %p315 = por %p313, %p314
      %p316 = scmp.ne.s32.totalorder %s305, %s306
      %p317 = scmp.eq.s32.totalorder %s55, 0
      %p318 = por %p316, %p317
      %p319 = scmp.ne.s32.totalorder %s305, %s306
      %p320 = scmp.eq.s32.totalorder %s56, 3
      %p321 = por %p319, %p320
      %p323 = scmp.ne.s32.totalorder %s306, %s322
      %p324 = scmp.eq.s32.totalorder %s56, 0
      %p325 = por %p323, %p324
      %s326 = ssub.s32 %s57, %s69
      %p327 = scmp.eq.s32.totalorder %s326, 0
      %s329 = sadd.s32 %s328, 1
      %s330 = scalar_select %p327, %s328, %s329
      %p333 = pneg %p327
      %p334 = scmp.eq.s32.totalorder %s50, 3
      %p335 = por %p333, %p334
      %p336 = scmp.ne.s32.totalorder %s328, %s331
      %p337 = scmp.eq.s32.totalorder %s50, 0
      %p338 = por %p336, %p337
      %p339 = scmp.ne.s32.totalorder %s328, %s331
      %p340 = scmp.eq.s32.totalorder %s55, 3
      %p341 = por %p339, %p340
      %p342 = scmp.ne.s32.totalorder %s331, %s332
      %p343 = scmp.eq.s32.totalorder %s55, 0
      %p344 = por %p342, %p343
      %p345 = scmp.ne.s32.totalorder %s331, %s332
      %p346 = scmp.eq.s32.totalorder %s56, 3
      %p347 = por %p345, %p346
      %p349 = scmp.ne.s32.totalorder %s332, %s348
      %p350 = scmp.eq.s32.totalorder %s56, 0
      %p351 = por %p349, %p350
      %p352 = scmp.le.s32.totalorder 1, %s50
      %p353 = scmp.lt.s32.totalorder %s50, 5
      %p354 = pnand %p352, %p353
      %p355 = pneg %p354
      // Predicated region
      $region9: #{tpu_custom_call.1} parent=5 // pred_check
        _
      $region10: #{tpu_custom_call.1} parent=5 // pred_check_branch
        %357 = sbr.rel (%p354) target = $region12
      $region11: #{tpu_custom_call.1} parent=5 // pred_region
        %s358 = ssub.s32 %s50, 1
      $region12: #{tpu_custom_call.1} parent=5 // pred_fallthru
        _
      %p359 = scmp.lt.s32.totalorder %s50, 4
      // Predicated region
      $region13: #{tpu_custom_call.1} parent=5 // pred_check
        %p360 = pneg %p359
      $region14: #{tpu_custom_call.1} parent=5 // pred_check_branch
        %362 = sbr.rel (%p360) target = $region16
      $region15: #{tpu_custom_call.1} parent=5 // pred_region
        // Predicated region
        $region17: #{tpu_custom_call.1} parent=15 // pred_check
          %p363 = pneg %p88
        $region18: #{tpu_custom_call.1} parent=15 // pred_check_branch
          %365 = sbr.rel (%p363) target = $region20
        $region19: #{tpu_custom_call.1} parent=15 // pred_region
          %s366 = smul.u32 %s57, 2
          %s367 = sadd.s32 %s366, %s58
          %s368 = sld [smem:[#allocation3 + %s367]]
          %s369 = smul.u32 16, %s368
          %p370 = scmp.lt.s32.totalorder %s369, 31
          %s371 = scalar_select %p370, %s369, 31
          %s372 = smul.addr %s371, 8
          %s373 = scalar_lea.vmem %s5, %s372
          %s374 = smul.u32 %s57, 2
          %s375 = sadd.s32 %s374, %s58
          %s376 = sld [smem:[#allocation3 + %s375]]
          %s377 = smul.u32 16, %s376
        $region20: #{tpu_custom_call.1} parent=15 // pred_fallthru
          _
        // Predicated region
        $region21: #{tpu_custom_call.1} parent=15 // pred_check
          %p378 = pneg %p120
        $region22: #{tpu_custom_call.1} parent=15 // pred_check_branch
          %380 = sbr.rel (%p378) target = $region24
        $region23: #{tpu_custom_call.1} parent=15 // pred_region
          %s381 = smul.u32 %s57, 2
          %s382 = sadd.s32 %s381, %s58
          %s383 = sld [smem:[#allocation4 + %s382]]
          %s384 = smul.u32 16, %s383
          %p385 = scmp.lt.s32.totalorder %s384, 31
          %s386 = scalar_select %p385, %s384, 31
          %s387 = smul.addr %s386, 8
          %s388 = scalar_lea.vmem %s6, %s387
          %s389 = smul.u32 %s57, 2
          %s390 = sadd.s32 %s389, %s58
          %s391 = sld [smem:[#allocation4 + %s390]]
          %s392 = smul.u32 16, %s391
        $region24: #{tpu_custom_call.1} parent=15 // pred_fallthru
          _
        // Predicated region
        $region25: #{tpu_custom_call.1} parent=15 // pred_check
          %p393 = pneg %p152
        $region26: #{tpu_custom_call.1} parent=15 // pred_check_branch
          %395 = sbr.rel (%p393) target = $region28
        $region27: #{tpu_custom_call.1} parent=15 // pred_region
          %s396 = smul.u32 %s57, 2
          %s397 = sadd.s32 %s396, %s58
          %s398 = sld [smem:[#allocation3 + %s397]]
          %s399 = smul.u32 16, %s398
          %p400 = scmp.lt.s32.totalorder %s399, 31
          %s401 = scalar_select %p400, %s399, 31
          %s402 = smul.addr %s401, 8
          %s403 = scalar_lea.vmem %s7, %s402
          %s404 = smul.u32 %s57, 2
          %s405 = sadd.s32 %s404, %s58
          %s406 = sld [smem:[#allocation3 + %s405]]
          %s407 = smul.u32 16, %s406
        $region28: #{tpu_custom_call.1} parent=15 // pred_fallthru
          _
        // Predicated region
        $region29: #{tpu_custom_call.1} parent=15 // pred_check
          %p408 = pneg %p184
        $region30: #{tpu_custom_call.1} parent=15 // pred_check_branch
          %410 = sbr.rel (%p408) target = $region32
        $region31: #{tpu_custom_call.1} parent=15 // pred_region
          %s411 = smul.u32 %s57, 2
          %s412 = sadd.s32 %s411, %s58
          %s413 = sld [smem:[#allocation4 + %s412]]
          %p414 = scmp.lt.s32.totalorder %s413, 1
          %s415 = scalar_select %p414, %s413, 1
          %s416 = scalar_lea.vmem %s8, %s415
          %s417 = smul.u32 %s57, 2
          %s418 = sadd.s32 %s417, %s58
          %s419 = sld [smem:[#allocation4 + %s418]]
        $region32: #{tpu_custom_call.1} parent=15 // pred_fallthru
          _
        // Predicated region
        $region33: #{tpu_custom_call.1} parent=15 // pred_check
          %p420 = pneg %p216
        $region34: #{tpu_custom_call.1} parent=15 // pred_check_branch
          %422 = sbr.rel (%p420) target = $region36
        $region35: #{tpu_custom_call.1} parent=15 // pred_region
          %s423 = smul.u32 %s57, 2
          %s424 = sadd.s32 %s423, %s58
          %s425 = sld [smem:[#allocation3 + %s424]]
          %s426 = smul.u32 16, %s425
          %p427 = scmp.lt.s32.totalorder %s426, 31
          %s428 = scalar_select %p427, %s426, 31
          %s429 = smul.addr %s428, 8
          %s430 = scalar_lea.vmem %s9, %s429
          %s431 = smul.u32 %s57, 2
          %s432 = sadd.s32 %s431, %s58
          %s433 = sld [smem:[#allocation3 + %s432]]
          %s434 = smul.u32 16, %s433
        $region36: #{tpu_custom_call.1} parent=15 // pred_fallthru
          _
        // Predicated region
        $region37: #{tpu_custom_call.1} parent=15 // pred_check
          %p435 = pneg %p248
        $region38: #{tpu_custom_call.1} parent=15 // pred_check_branch
          %437 = sbr.rel (%p435) target = $region40
        $region39: #{tpu_custom_call.1} parent=15 // pred_region
          %s438 = smul.u32 %s57, 2
          %s439 = sadd.s32 %s438, %s58
          %s440 = sld [smem:[#allocation4 + %s439]]
          %p441 = scmp.lt.s32.totalorder %s440, 1
          %s442 = scalar_select %p441, %s440, 1
          %s443 = scalar_lea.vmem %s10, %s442
          %s444 = smul.u32 %s57, 2
          %s445 = sadd.s32 %s444, %s58
          %s446 = sld [smem:[#allocation4 + %s445]]
        $region40: #{tpu_custom_call.1} parent=15 // pred_fallthru
          _
        // Predicated region
        $region41: #{tpu_custom_call.1} parent=15 // pred_check
          %p447 = pneg %p280
        $region42: #{tpu_custom_call.1} parent=15 // pred_check_branch
          %449 = sbr.rel (%p447) target = $region44
        $region43: #{tpu_custom_call.1} parent=15 // pred_region
          %s450 = smul.u32 %s57, 2
          %s451 = sadd.s32 %s450, %s58
          %s452 = sld [smem:[#allocation3 + %s451]]
          %s453 = smul.u32 16, %s452
          %p454 = scmp.lt.s32.totalorder %s453, 31
          %s455 = scalar_select %p454, %s453, 31
          %s456 = smul.addr %s455, 8
          %s457 = scalar_lea.vmem %s11, %s456
          %s458 = smul.u32 %s57, 2
          %s459 = sadd.s32 %s458, %s58
          %s460 = sld [smem:[#allocation3 + %s459]]
          %s461 = smul.u32 16, %s460
        $region44: #{tpu_custom_call.1} parent=15 // pred_fallthru
          _
        // Predicated region
        $region45: #{tpu_custom_call.1} parent=15 // pred_check
          %p462 = pneg %p312
        $region46: #{tpu_custom_call.1} parent=15 // pred_check_branch
          %464 = sbr.rel (%p462) target = $region48
        $region47: #{tpu_custom_call.1} parent=15 // pred_region
          %s465 = smul.u32 %s57, 2
          %s466 = sadd.s32 %s465, %s58
          %s467 = sld [smem:[#allocation4 + %s466]]
          %p468 = scmp.lt.s32.totalorder %s467, 1
          %s469 = scalar_select %p468, %s467, 1
          %s470 = scalar_lea.vmem %s12, %s469
          %s471 = smul.u32 %s57, 2
          %s472 = sadd.s32 %s471, %s58
          %s473 = sld [smem:[#allocation4 + %s472]]
        $region48: #{tpu_custom_call.1} parent=15 // pred_fallthru
          _
      $region16: #{tpu_custom_call.1} parent=5 // pred_fallthru
        _
      %p474 = scmp.le.s32.totalorder 1, %s50
      %p475 = scmp.lt.s32.totalorder %s50, 5
      %p476 = pnand %p474, %p475
      %p477 = pneg %p476
      // Predicated region
      $region49: #{tpu_custom_call.1} parent=5 // pred_check
        _
      $region50: #{tpu_custom_call.1} parent=5 // pred_check_branch
        %479 = sbr.rel (%p476) target = $region52
      $region51: #{tpu_custom_call.1} parent=5 // pred_region
        %s480 = ssub.s32 %s50, 1
        %s481 = smul.u32 %s59, 2
        %s482 = sadd.s32 %s481, %s60
        %s483 = sld [smem:[#allocation3 + %s482]]
        %s484 = smul.u32 16, %s483
        %p485 = scmp.lt.s32.totalorder %s484, 31
        %s486 = scalar_select %p485, %s484, 31
        %s487 = smul.addr %s486, 8
        %s488 = scalar_lea.vmem %s5, %s487
        %p489 = pneg %p94
        %p490 = pneg %p91
        %s491 = smul.u32 %s59, 2
        %s492 = sadd.s32 %s491, %s60
        %s493 = sld [smem:[#allocation4 + %s492]]
        %s494 = smul.u32 16, %s493
        %p495 = scmp.lt.s32.totalorder %s494, 31
        %s496 = scalar_select %p495, %s494, 31
        %s497 = smul.addr %s496, 8
        %s498 = scalar_lea.vmem %s6, %s497
        %p499 = pneg %p126
        %p500 = pneg %p123
        %s501 = smul.u32 %s59, 2
        %s502 = sadd.s32 %s501, %s60
        %s503 = sld [smem:[#allocation3 + %s502]]
        %s504 = smul.u32 16, %s503
        %p505 = scmp.lt.s32.totalorder %s504, 31
        %s506 = scalar_select %p505, %s504, 31
        %s507 = smul.addr %s506, 8
        %s508 = scalar_lea.vmem %s7, %s507
        %p509 = pneg %p158
        %p510 = pneg %p155
        %s511 = smul.u32 %s59, 2
        %s512 = sadd.s32 %s511, %s60
        %s513 = sld [smem:[#allocation4 + %s512]]
        %p514 = scmp.lt.s32.totalorder %s513, 1
        %s515 = scalar_select %p514, %s513, 1
        %s516 = scalar_lea.vmem %s8, %s515
        %p517 = pneg %p190
        %p518 = pneg %p187
        %s519 = smul.u32 %s59, 2
        %s520 = sadd.s32 %s519, %s60
        %s521 = sld [smem:[#allocation3 + %s520]]
        %s522 = smul.u32 16, %s521
        %p523 = scmp.lt.s32.totalorder %s522, 31
        %s524 = scalar_select %p523, %s522, 31
        %s525 = smul.addr %s524, 8
        %s526 = scalar_lea.vmem %s9, %s525
        %p527 = pneg %p222
        %p528 = pneg %p219
        %s529 = smul.u32 %s59, 2
        %s530 = sadd.s32 %s529, %s60
        %s531 = sld [smem:[#allocation4 + %s530]]
        %p532 = scmp.lt.s32.totalorder %s531, 1
        %s533 = scalar_select %p532, %s531, 1
        %s534 = scalar_lea.vmem %s10, %s533
        %p535 = pneg %p254
        %p536 = pneg %p251
        %s537 = smul.u32 %s59, 2
        %s538 = sadd.s32 %s537, %s60
        %s539 = sld [smem:[#allocation3 + %s538]]
        %s540 = smul.u32 16, %s539
        %p541 = scmp.lt.s32.totalorder %s540, 31
        %s542 = scalar_select %p541, %s540, 31
        %s543 = smul.addr %s542, 8
        %s544 = scalar_lea.vmem %s11, %s543
        %p545 = pneg %p286
        %p546 = pneg %p283
        %s547 = smul.u32 %s59, 2
        %s548 = sadd.s32 %s547, %s60
        %s549 = sld [smem:[#allocation4 + %s548]]
        %p550 = scmp.lt.s32.totalorder %s549, 1
        %s551 = scalar_select %p550, %s549, 1
        %s552 = scalar_lea.vmem %s12, %s551
        %p553 = pneg %p318
        %p554 = pneg %p315
        %p555 = pneg %p344
        %p556 = pneg %p341
        %s557 = sand.u32 %s331, 1
        %s558 = scalar_lea.sflag [#allocation9], %s557
        %s559 = sand.u32 %s331, 1
        %s560 = smul.addr %s559, 8
        %s561 = scalar_lea.vmem [#allocation8], %s560
        %s562 = smul.u32 %s59, 2
        %s563 = sadd.s32 %s562, %s60
        %s564 = sld [smem:[#allocation3 + %s563]]
        %s565 = smul.u32 16, %s564
        %p566 = scmp.lt.s32.totalorder %s565, 31
        %s567 = scalar_select %p566, %s565, 31
        %s568 = smul.addr %s567, 8
        %s569 = scalar_lea.vmem %s5, %s568
        %s570 = smul.u32 %s59, 2
        %s571 = sadd.s32 %s570, %s60
        %s572 = sld [smem:[#allocation3 + %s571]]
        %s573 = smul.u32 16, %s572
        %s574 = smul.u32 %s59, 2
        %s575 = sadd.s32 %s574, %s60
        %s576 = sld [smem:[#allocation4 + %s575]]
        %s577 = smul.u32 16, %s576
        %p578 = scmp.lt.s32.totalorder %s577, 31
        %s579 = scalar_select %p578, %s577, 31
        %s580 = smul.addr %s579, 8
        %s581 = scalar_lea.vmem %s6, %s580
        %s582 = smul.u32 %s59, 2
        %s583 = sadd.s32 %s582, %s60
        %s584 = sld [smem:[#allocation4 + %s583]]
        %s585 = smul.u32 16, %s584
        %s586 = smul.u32 %s59, 2
        %s587 = sadd.s32 %s586, %s60
        %s588 = sld [smem:[#allocation3 + %s587]]
        %s589 = smul.u32 16, %s588
        %p590 = scmp.lt.s32.totalorder %s589, 31
        %s591 = scalar_select %p590, %s589, 31
        %s592 = smul.addr %s591, 8
        %s593 = scalar_lea.vmem %s7, %s592
        %s594 = smul.u32 %s59, 2
        %s595 = sadd.s32 %s594, %s60
        %s596 = sld [smem:[#allocation3 + %s595]]
        %s597 = smul.u32 16, %s596
        %s598 = smul.u32 %s59, 2
        %s599 = sadd.s32 %s598, %s60
        %s600 = sld [smem:[#allocation4 + %s599]]
        %p601 = scmp.lt.s32.totalorder %s600, 1
        %s602 = scalar_select %p601, %s600, 1
        %s603 = scalar_lea.vmem %s8, %s602
        %s604 = smul.u32 %s59, 2
        %s605 = sadd.s32 %s604, %s60
        %s606 = sld [smem:[#allocation4 + %s605]]
        %s607 = smul.u32 %s59, 2
        %s608 = sadd.s32 %s607, %s60
        %s609 = sld [smem:[#allocation3 + %s608]]
        %s610 = smul.u32 16, %s609
        %p611 = scmp.lt.s32.totalorder %s610, 31
        %s612 = scalar_select %p611, %s610, 31
        %s613 = smul.addr %s612, 8
        %s614 = scalar_lea.vmem %s9, %s613
        %s615 = smul.u32 %s59, 2
        %s616 = sadd.s32 %s615, %s60
        %s617 = sld [smem:[#allocation3 + %s616]]
        %s618 = smul.u32 16, %s617
        %s619 = smul.u32 %s59, 2
        %s620 = sadd.s32 %s619, %s60
        %s621 = sld [smem:[#allocation4 + %s620]]
        %p622 = scmp.lt.s32.totalorder %s621, 1
        %s623 = scalar_select %p622, %s621, 1
        %s624 = scalar_lea.vmem %s10, %s623
        %s625 = smul.u32 %s59, 2
        %s626 = sadd.s32 %s625, %s60
        %s627 = sld [smem:[#allocation4 + %s626]]
        %s628 = smul.u32 %s59, 2
        %s629 = sadd.s32 %s628, %s60
        %s630 = sld [smem:[#allocation3 + %s629]]
        %s631 = smul.u32 16, %s630
        %p632 = scmp.lt.s32.totalorder %s631, 31
        %s633 = scalar_select %p632, %s631, 31
        %s634 = smul.addr %s633, 8
        %s635 = scalar_lea.vmem %s11, %s634
        %s636 = smul.u32 %s59, 2
        %s637 = sadd.s32 %s636, %s60
        %s638 = sld [smem:[#allocation3 + %s637]]
        %s639 = smul.u32 16, %s638
        %s640 = smul.u32 %s59, 2
        %s641 = sadd.s32 %s640, %s60
        %s642 = sld [smem:[#allocation4 + %s641]]
        %p643 = scmp.lt.s32.totalorder %s642, 1
        %s644 = scalar_select %p643, %s642, 1
        %s645 = scalar_lea.vmem %s12, %s644
        %s646 = smul.u32 %s59, 2
        %s647 = sadd.s32 %s646, %s60
        %s648 = sld [smem:[#allocation4 + %s647]]
        %p649 = scmp.eq.s32.totalorder %s60, 0
        // Predicated region
        $region53: #{tpu_custom_call.1} parent=51 // pred_check
          %p650 = pneg %p649
        $region54: #{tpu_custom_call.1} parent=51 // pred_check_branch
          %652 = sbr.rel (%p650) target = $region56
        $region55: #{tpu_custom_call.1} parent=51 // pred_region
          %653 = vst [vmem:[%s561] sm:$0xff] 0.0
        $region56: #{tpu_custom_call.1} parent=51 // pred_fallthru
          _
        %s654 = smul.u32 %s59, 2
        %s655 = sadd.s32 %s654, %s60
        %s656 = sld [smem:[#allocation3 + %s655]]
        %s657 = sld [smem:[#allocation4 + %s655]]
        %s658 = sld [smem:[#allocation5 + %s655]]
        %s659 = sld [smem:[#allocation7 + %s656]]
        %s660 = sld [smem:[#allocation6 + %s657]]
        %p661 = scmp.ge.s32.totalorder %s659, %s660
        %s662 = sld [smem:[#allocation7 + %s657]]
        %s663 = sld [smem:[#allocation6 + %s656]]
        %p664 = scmp.ge.s32.totalorder %s662, %s663
        %p665 = pnand %p661, %p664
        %p666 = pneg %p665
        %p667 = scmp.gt.s32.totalorder %s658, 0
        %p668 = pnand %p666, %p667
        %p669 = pneg %p668
        // Predicated region
        $region57: #{tpu_custom_call.1} parent=51 // pred_check
          _
        $region58: #{tpu_custom_call.1} parent=51 // pred_check_branch
          %671 = sbr.rel (%p668) target = $region60
        $region59: #{tpu_custom_call.1} parent=51 // pred_region
          %v672 = vld [vmem:[%s569] sm:$0xff]
          %v673 = vld [vmem:[%s569 + $0x8] sm:$0xff]
          %v674 = vld [vmem:[%s569 + $0x10] sm:$0xff]
          %v675 = vld [vmem:[%s569 + $0x18] sm:$0xff]
          %v676 = vld [vmem:[%s569 + $0x20] sm:$0xff]
          %v677 = vld [vmem:[%s569 + $0x28] sm:$0xff]
          %v678 = vld [vmem:[%s569 + $0x30] sm:$0xff]
          %v679 = vld [vmem:[%s569 + $0x38] sm:$0xff]
          %v680 = vld [vmem:[%s569 + $0x40] sm:$0xff]
          %v681 = vld [vmem:[%s569 + $0x48] sm:$0xff]
          %v682 = vld [vmem:[%s569 + $0x50] sm:$0xff]
          %v683 = vld [vmem:[%s569 + $0x58] sm:$0xff]
          %v684 = vld [vmem:[%s569 + $0x60] sm:$0xff]
          %v685 = vld [vmem:[%s569 + $0x68] sm:$0xff]
          %v686 = vld [vmem:[%s569 + $0x70] sm:$0xff]
          %v687 = vld [vmem:[%s569 + $0x78] sm:$0xff]
          %v688 = vld [vmem:[%s581] sm:$0xff]
          %v689 = vld [vmem:[%s581 + $0x8] sm:$0xff]
          %v690 = vld [vmem:[%s581 + $0x10] sm:$0xff]
          %v691 = vld [vmem:[%s581 + $0x18] sm:$0xff]
          %v692 = vld [vmem:[%s581 + $0x20] sm:$0xff]
          %v693 = vld [vmem:[%s581 + $0x28] sm:$0xff]
          %v694 = vld [vmem:[%s581 + $0x30] sm:$0xff]
          %v695 = vld [vmem:[%s581 + $0x38] sm:$0xff]
          %v696 = vld [vmem:[%s581 + $0x40] sm:$0xff]
          %v697 = vld [vmem:[%s581 + $0x48] sm:$0xff]
          %v698 = vld [vmem:[%s581 + $0x50] sm:$0xff]
          %v699 = vld [vmem:[%s581 + $0x58] sm:$0xff]
          %v700 = vld [vmem:[%s581 + $0x60] sm:$0xff]
          %v701 = vld [vmem:[%s581 + $0x68] sm:$0xff]
          %v702 = vld [vmem:[%s581 + $0x70] sm:$0xff]
          %v703 = vld [vmem:[%s581 + $0x78] sm:$0xff]
          %704 = vmatpush.xpose.msra.mxu0 %v703
          %705 = vmatpush.xpose.msra.mxu0 %v702
          %706 = vmatpush.xpose.msra.mxu0 %v701
          %707 = vmatpush.xpose.msra.mxu0 %v700
          %708 = vmatpush.xpose.msra.mxu0 %v699
          %709 = vmatpush.xpose.msra.mxu0 %v698
          %710 = vmatpush.xpose.msra.mxu0 %v697
          %711 = vmatpush.xpose.msra.mxu0 %v696
          %712 = vmatpush.xpose.msra.mxu0 %v695
          %713 = vmatpush.xpose.msra.mxu0 %v694
          %714 = vmatpush.xpose.msra.mxu0 %v693
          %715 = vmatpush.xpose.msra.mxu0 %v692
          %716 = vmatpush.xpose.msra.mxu0 %v691
          %717 = vmatpush.xpose.msra.mxu0 %v690
          %718 = vmatpush.xpose.msra.mxu0 %v689
          %719 = vmatpush.xpose.msra.mxu0 %v688
          %720 = vmatmul.f32.gmra.mxu0 %v672
          %v721 = vpop.f32.mrf.mxu0
          %v722 = vadd.f32 0.0, %v721
          %723 = vmatmul.f32.gmra.mxu0 %v673
          %v724 = vpop.f32.mrf.mxu0
          %v725 = vadd.f32 0.0, %v724
          %726 = vmatmul.f32.gmra.mxu0 %v674
          %v727 = vpop.f32.mrf.mxu0
          %v728 = vadd.f32 0.0, %v727
          %729 = vmatmul.f32.gmra.mxu0 %v675
          %v730 = vpop.f32.mrf.mxu0
          %v731 = vadd.f32 0.0, %v730
          %732 = vmatmul.f32.gmra.mxu0 %v676
          %v733 = vpop.f32.mrf.mxu0
          %v734 = vadd.f32 0.0, %v733
          %735 = vmatmul.f32.gmra.mxu0 %v677
          %v736 = vpop.f32.mrf.mxu0
          %v737 = vadd.f32 0.0, %v736
          %738 = vmatmul.f32.gmra.mxu0 %v678
          %v739 = vpop.f32.mrf.mxu0
          %v740 = vadd.f32 0.0, %v739
          %741 = vmatmul.f32.gmra.mxu0 %v679
          %v742 = vpop.f32.mrf.mxu0
          %v743 = vadd.f32 0.0, %v742
          %744 = vmatmul.f32.gmra.mxu0 %v680
          %v745 = vpop.f32.mrf.mxu0
          %v746 = vadd.f32 0.0, %v745
          %747 = vmatmul.f32.gmra.mxu0 %v681
          %v748 = vpop.f32.mrf.mxu0
          %v749 = vadd.f32 0.0, %v748
          %750 = vmatmul.f32.gmra.mxu0 %v682
          %v751 = vpop.f32.mrf.mxu0
          %v752 = vadd.f32 0.0, %v751
          %753 = vmatmul.f32.gmra.mxu0 %v683
          %v754 = vpop.f32.mrf.mxu0
          %v755 = vadd.f32 0.0, %v754
          %756 = vmatmul.f32.gmra.mxu0 %v684
          %v757 = vpop.f32.mrf.mxu0
          %v758 = vadd.f32 0.0, %v757
          %759 = vmatmul.f32.gmra.mxu0 %v685
          %v760 = vpop.f32.mrf.mxu0
          %v761 = vadd.f32 0.0, %v760
          %762 = vmatmul.f32.gmra.mxu0 %v686
          %v763 = vpop.f32.mrf.mxu0
          %v764 = vadd.f32 0.0, %v763
          %765 = vmatmul.f32.gmra.mxu0 %v687
          %v766 = vpop.f32.mrf.mxu0
          %v767 = vadd.f32 0.0, %v766
          %768 = vdwg.mxu0
          %v769 = vld [vmem:[%s603] sm:$0x1]
          %v770 = vmul.f32 %v722, 2.0
          %v771 = vmul.f32 %v725, 2.0
          %v772 = vmul.f32 %v728, 2.0
          %v773 = vmul.f32 %v731, 2.0
          %v774 = vmul.f32 %v734, 2.0
          %v775 = vmul.f32 %v737, 2.0
          %v776 = vmul.f32 %v740, 2.0
          %v777 = vmul.f32 %v743, 2.0
          %v778 = vmul.f32 %v746, 2.0
          %v779 = vmul.f32 %v749, 2.0
          %v780 = vmul.f32 %v752, 2.0
          %v781 = vmul.f32 %v755, 2.0
          %v782 = vmul.f32 %v758, 2.0
          %v783 = vmul.f32 %v761, 2.0
          %v784 = vmul.f32 %v764, 2.0
          %v785 = vmul.f32 %v767, 2.0
          %v787 = vperm.slane %v769, 0
          %v789 = vsub.f32 %v787, %v770
          %v790 = vsub.f32 %v787, %v771
          %v791 = vsub.f32 %v787, %v772
          %v792 = vsub.f32 %v787, %v773
          %v793 = vsub.f32 %v787, %v774
          %v794 = vsub.f32 %v787, %v775
          %v795 = vsub.f32 %v787, %v776
          %v796 = vsub.f32 %v787, %v777
          %v797 = vsub.f32 %v787, %v778
          %v798 = vsub.f32 %v787, %v779
          %v799 = vsub.f32 %v787, %v780
          %v800 = vsub.f32 %v787, %v781
          %v801 = vsub.f32 %v787, %v782
          %v802 = vsub.f32 %v787, %v783
          %v803 = vsub.f32 %v787, %v784
          %v804 = vsub.f32 %v787, %v785
          %v805 = vld [vmem:[%s593] sm:$0xff]
          %v806 = vld [vmem:[%s593 + $0x8] sm:$0xff]
          %v807 = vld [vmem:[%s593 + $0x10] sm:$0xff]
          %v808 = vld [vmem:[%s593 + $0x18] sm:$0xff]
          %v809 = vld [vmem:[%s593 + $0x20] sm:$0xff]
          %v810 = vld [vmem:[%s593 + $0x28] sm:$0xff]
          %v811 = vld [vmem:[%s593 + $0x30] sm:$0xff]
          %v812 = vld [vmem:[%s593 + $0x38] sm:$0xff]
          %v813 = vld [vmem:[%s593 + $0x40] sm:$0xff]
          %v814 = vld [vmem:[%s593 + $0x48] sm:$0xff]
          %v815 = vld [vmem:[%s593 + $0x50] sm:$0xff]
          %v816 = vld [vmem:[%s593 + $0x58] sm:$0xff]
          %v817 = vld [vmem:[%s593 + $0x60] sm:$0xff]
          %v818 = vld [vmem:[%s593 + $0x68] sm:$0xff]
          %v819 = vld [vmem:[%s593 + $0x70] sm:$0xff]
          %v820 = vld [vmem:[%s593 + $0x78] sm:$0xff]
          %822 = vset.pattern.permute.xlu0 0
          %823 = vperm.xlu0 %822, %v805
          %v824 = vpop.permute.xlu0 %823
          %827 = vset.pattern.permute.xlu0 0
          %828 = vperm.xlu0 %827, %v806
          %v829 = vpop.permute.xlu0 %828
          %832 = vset.pattern.permute.xlu0 0
          %833 = vperm.xlu0 %832, %v807
          %v834 = vpop.permute.xlu0 %833
          %837 = vset.pattern.permute.xlu0 0
          %838 = vperm.xlu0 %837, %v808
          %v839 = vpop.permute.xlu0 %838
          %842 = vset.pattern.permute.xlu0 0
          %843 = vperm.xlu0 %842, %v809
          %v844 = vpop.permute.xlu0 %843
          %847 = vset.pattern.permute.xlu0 0
          %848 = vperm.xlu0 %847, %v810
          %v849 = vpop.permute.xlu0 %848
          %852 = vset.pattern.permute.xlu0 0
          %853 = vperm.xlu0 %852, %v811
          %v854 = vpop.permute.xlu0 %853
          %857 = vset.pattern.permute.xlu0 0
          %858 = vperm.xlu0 %857, %v812
          %v859 = vpop.permute.xlu0 %858
          %862 = vset.pattern.permute.xlu0 0
          %863 = vperm.xlu0 %862, %v813
          %v864 = vpop.permute.xlu0 %863
          %867 = vset.pattern.permute.xlu0 0
          %868 = vperm.xlu0 %867, %v814
          %v869 = vpop.permute.xlu0 %868
          %872 = vset.pattern.permute.xlu0 0
          %873 = vperm.xlu0 %872, %v815
          %v874 = vpop.permute.xlu0 %873
          %877 = vset.pattern.permute.xlu0 0
          %878 = vperm.xlu0 %877, %v816
          %v879 = vpop.permute.xlu0 %878
          %882 = vset.pattern.permute.xlu0 0
          %883 = vperm.xlu0 %882, %v817
          %v884 = vpop.permute.xlu0 %883
          %887 = vset.pattern.permute.xlu0 0
          %888 = vperm.xlu0 %887, %v818
          %v889 = vpop.permute.xlu0 %888
          %892 = vset.pattern.permute.xlu0 0
          %893 = vperm.xlu0 %892, %v819
          %v894 = vpop.permute.xlu0 %893
          %897 = vset.pattern.permute.xlu0 0
          %898 = vperm.xlu0 %897, %v820
          %v899 = vpop.permute.xlu0 %898
          %v901 = vadd.f32 %v789, %v824
          %v902 = vadd.f32 %v790, %v829
          %v903 = vadd.f32 %v791, %v834
          %v904 = vadd.f32 %v792, %v839
          %v905 = vadd.f32 %v793, %v844
          %v906 = vadd.f32 %v794, %v849
          %v907 = vadd.f32 %v795, %v854
          %v908 = vadd.f32 %v796, %v859
          %v909 = vadd.f32 %v797, %v864
          %v910 = vadd.f32 %v798, %v869
          %v911 = vadd.f32 %v799, %v874
          %v912 = vadd.f32 %v800, %v879
          %v913 = vadd.f32 %v801, %v884
          %v914 = vadd.f32 %v802, %v889
          %v915 = vadd.f32 %v803, %v894
          %v916 = vadd.f32 %v804, %v899
          %v917 = vmax.f32 %v901, 0.0
          %v918 = vmax.f32 %v902, 0.0
          %v919 = vmax.f32 %v903, 0.0
          %v920 = vmax.f32 %v904, 0.0
          %v921 = vmax.f32 %v905, 0.0
          %v922 = vmax.f32 %v906, 0.0
          %v923 = vmax.f32 %v907, 0.0
          %v924 = vmax.f32 %v908, 0.0
          %v925 = vmax.f32 %v909, 0.0
          %v926 = vmax.f32 %v910, 0.0
          %v927 = vmax.f32 %v911, 0.0
          %v928 = vmax.f32 %v912, 0.0
          %v929 = vmax.f32 %v913, 0.0
          %v930 = vmax.f32 %v914, 0.0
          %v931 = vmax.f32 %v915, 0.0
          %v932 = vmax.f32 %v916, 0.0
          %v933 = vrsqrt.pop %v917
          %v934 = vmul.f32 %v933, %v917
          %v935 = vmul.f32 %v934, %v933
          %v936 = vmul.f32 0.5, %v935
          %v937 = vsub.f32 1.5, %v936
          %v938 = vmul.f32 %v933, %v937
          %v939 = vmul.f32 %v917, %v938
          %vm940 = vcmp.eq.f32.partialorder %v917, inf
          %v941 = vsel %vm940, %v917, %v939
          %vm942 = vcmp.eq.f32.partialorder %v917, 0.0
          %v943 = vand.u32 %v917, 2147483648
          %v944 = vsel %vm942, %v943, %v941
          %v945 = vrsqrt.pop %v918
          %v946 = vmul.f32 %v945, %v918
          %v947 = vmul.f32 %v946, %v945
          %v948 = vmul.f32 0.5, %v947
          %v949 = vsub.f32 1.5, %v948
          %v950 = vmul.f32 %v945, %v949
          %v951 = vmul.f32 %v918, %v950
          %vm952 = vcmp.eq.f32.partialorder %v918, inf
          %v953 = vsel %vm952, %v918, %v951
          %vm954 = vcmp.eq.f32.partialorder %v918, 0.0
          %v955 = vand.u32 %v918, 2147483648
          %v956 = vsel %vm954, %v955, %v953
          %v957 = vrsqrt.pop %v919
          %v958 = vmul.f32 %v957, %v919
          %v959 = vmul.f32 %v958, %v957
          %v960 = vmul.f32 0.5, %v959
          %v961 = vsub.f32 1.5, %v960
          %v962 = vmul.f32 %v957, %v961
          %v963 = vmul.f32 %v919, %v962
          %vm964 = vcmp.eq.f32.partialorder %v919, inf
          %v965 = vsel %vm964, %v919, %v963
          %vm966 = vcmp.eq.f32.partialorder %v919, 0.0
          %v967 = vand.u32 %v919, 2147483648
          %v968 = vsel %vm966, %v967, %v965
          %v969 = vrsqrt.pop %v920
          %v970 = vmul.f32 %v969, %v920
          %v971 = vmul.f32 %v970, %v969
          %v972 = vmul.f32 0.5, %v971
          %v973 = vsub.f32 1.5, %v972
          %v974 = vmul.f32 %v969, %v973
          %v975 = vmul.f32 %v920, %v974
          %vm976 = vcmp.eq.f32.partialorder %v920, inf
          %v977 = vsel %vm976, %v920, %v975
          %vm978 = vcmp.eq.f32.partialorder %v920, 0.0
          %v979 = vand.u32 %v920, 2147483648
          %v980 = vsel %vm978, %v979, %v977
          %v981 = vrsqrt.pop %v921
          %v982 = vmul.f32 %v981, %v921
          %v983 = vmul.f32 %v982, %v981
          %v984 = vmul.f32 0.5, %v983
          %v985 = vsub.f32 1.5, %v984
          %v986 = vmul.f32 %v981, %v985
          %v987 = vmul.f32 %v921, %v986
          %vm988 = vcmp.eq.f32.partialorder %v921, inf
          %v989 = vsel %vm988, %v921, %v987
          %vm990 = vcmp.eq.f32.partialorder %v921, 0.0
          %v991 = vand.u32 %v921, 2147483648
          %v992 = vsel %vm990, %v991, %v989
          %v993 = vrsqrt.pop %v922
          %v994 = vmul.f32 %v993, %v922
          %v995 = vmul.f32 %v994, %v993
          %v996 = vmul.f32 0.5, %v995
          %v997 = vsub.f32 1.5, %v996
          %v998 = vmul.f32 %v993, %v997
          %v999 = vmul.f32 %v922, %v998
          %vm1000 = vcmp.eq.f32.partialorder %v922, inf
          %v1001 = vsel %vm1000, %v922, %v999
          %vm1002 = vcmp.eq.f32.partialorder %v922, 0.0
          %v1003 = vand.u32 %v922, 2147483648
          %v1004 = vsel %vm1002, %v1003, %v1001
          %v1005 = vrsqrt.pop %v923
          %v1006 = vmul.f32 %v1005, %v923
          %v1007 = vmul.f32 %v1006, %v1005
          %v1008 = vmul.f32 0.5, %v1007
          %v1009 = vsub.f32 1.5, %v1008
          %v1010 = vmul.f32 %v1005, %v1009
          %v1011 = vmul.f32 %v923, %v1010
          %vm1012 = vcmp.eq.f32.partialorder %v923, inf
          %v1013 = vsel %vm1012, %v923, %v1011
          %vm1014 = vcmp.eq.f32.partialorder %v923, 0.0
          %v1015 = vand.u32 %v923, 2147483648
          %v1016 = vsel %vm1014, %v1015, %v1013
          %v1017 = vrsqrt.pop %v924
          %v1018 = vmul.f32 %v1017, %v924
          %v1019 = vmul.f32 %v1018, %v1017
          %v1020 = vmul.f32 0.5, %v1019
          %v1021 = vsub.f32 1.5, %v1020
          %v1022 = vmul.f32 %v1017, %v1021
          %v1023 = vmul.f32 %v924, %v1022
          %vm1024 = vcmp.eq.f32.partialorder %v924, inf
          %v1025 = vsel %vm1024, %v924, %v1023
          %vm1026 = vcmp.eq.f32.partialorder %v924, 0.0
          %v1027 = vand.u32 %v924, 2147483648
          %v1028 = vsel %vm1026, %v1027, %v1025
          %v1029 = vrsqrt.pop %v925
          %v1030 = vmul.f32 %v1029, %v925
          %v1031 = vmul.f32 %v1030, %v1029
          %v1032 = vmul.f32 0.5, %v1031
          %v1033 = vsub.f32 1.5, %v1032
          %v1034 = vmul.f32 %v1029, %v1033
          %v1035 = vmul.f32 %v925, %v1034
          %vm1036 = vcmp.eq.f32.partialorder %v925, inf
          %v1037 = vsel %vm1036, %v925, %v1035
          %vm1038 = vcmp.eq.f32.partialorder %v925, 0.0
          %v1039 = vand.u32 %v925, 2147483648
          %v1040 = vsel %vm1038, %v1039, %v1037
          %v1041 = vrsqrt.pop %v926
          %v1042 = vmul.f32 %v1041, %v926
          %v1043 = vmul.f32 %v1042, %v1041
          %v1044 = vmul.f32 0.5, %v1043
          %v1045 = vsub.f32 1.5, %v1044
          %v1046 = vmul.f32 %v1041, %v1045
          %v1047 = vmul.f32 %v926, %v1046
          %vm1048 = vcmp.eq.f32.partialorder %v926, inf
          %v1049 = vsel %vm1048, %v926, %v1047
          %vm1050 = vcmp.eq.f32.partialorder %v926, 0.0
          %v1051 = vand.u32 %v926, 2147483648
          %v1052 = vsel %vm1050, %v1051, %v1049
          %v1053 = vrsqrt.pop %v927
          %v1054 = vmul.f32 %v1053, %v927
          %v1055 = vmul.f32 %v1054, %v1053
          %v1056 = vmul.f32 0.5, %v1055
          %v1057 = vsub.f32 1.5, %v1056
          %v1058 = vmul.f32 %v1053, %v1057
          %v1059 = vmul.f32 %v927, %v1058
          %vm1060 = vcmp.eq.f32.partialorder %v927, inf
          %v1061 = vsel %vm1060, %v927, %v1059
          %vm1062 = vcmp.eq.f32.partialorder %v927, 0.0
          %v1063 = vand.u32 %v927, 2147483648
          %v1064 = vsel %vm1062, %v1063, %v1061
          %v1065 = vrsqrt.pop %v928
          %v1066 = vmul.f32 %v1065, %v928
          %v1067 = vmul.f32 %v1066, %v1065
          %v1068 = vmul.f32 0.5, %v1067
          %v1069 = vsub.f32 1.5, %v1068
          %v1070 = vmul.f32 %v1065, %v1069
          %v1071 = vmul.f32 %v928, %v1070
          %vm1072 = vcmp.eq.f32.partialorder %v928, inf
          %v1073 = vsel %vm1072, %v928, %v1071
          %vm1074 = vcmp.eq.f32.partialorder %v928, 0.0
          %v1075 = vand.u32 %v928, 2147483648
          %v1076 = vsel %vm1074, %v1075, %v1073
          %v1077 = vrsqrt.pop %v929
          %v1078 = vmul.f32 %v1077, %v929
          %v1079 = vmul.f32 %v1078, %v1077
          %v1080 = vmul.f32 0.5, %v1079
          %v1081 = vsub.f32 1.5, %v1080
          %v1082 = vmul.f32 %v1077, %v1081
          %v1083 = vmul.f32 %v929, %v1082
          %vm1084 = vcmp.eq.f32.partialorder %v929, inf
          %v1085 = vsel %vm1084, %v929, %v1083
          %vm1086 = vcmp.eq.f32.partialorder %v929, 0.0
          %v1087 = vand.u32 %v929, 2147483648
          %v1088 = vsel %vm1086, %v1087, %v1085
          %v1089 = vrsqrt.pop %v930
          %v1090 = vmul.f32 %v1089, %v930
          %v1091 = vmul.f32 %v1090, %v1089
          %v1092 = vmul.f32 0.5, %v1091
          %v1093 = vsub.f32 1.5, %v1092
          %v1094 = vmul.f32 %v1089, %v1093
          %v1095 = vmul.f32 %v930, %v1094
          %vm1096 = vcmp.eq.f32.partialorder %v930, inf
          %v1097 = vsel %vm1096, %v930, %v1095
          %vm1098 = vcmp.eq.f32.partialorder %v930, 0.0
          %v1099 = vand.u32 %v930, 2147483648
          %v1100 = vsel %vm1098, %v1099, %v1097
          %v1101 = vrsqrt.pop %v931
          %v1102 = vmul.f32 %v1101, %v931
          %v1103 = vmul.f32 %v1102, %v1101
          %v1104 = vmul.f32 0.5, %v1103
          %v1105 = vsub.f32 1.5, %v1104
          %v1106 = vmul.f32 %v1101, %v1105
          %v1107 = vmul.f32 %v931, %v1106
          %vm1108 = vcmp.eq.f32.partialorder %v931, inf
          %v1109 = vsel %vm1108, %v931, %v1107
          %vm1110 = vcmp.eq.f32.partialorder %v931, 0.0
          %v1111 = vand.u32 %v931, 2147483648
          %v1112 = vsel %vm1110, %v1111, %v1109
          %v1113 = vrsqrt.pop %v932
          %v1114 = vmul.f32 %v1113, %v932
          %v1115 = vmul.f32 %v1114, %v1113
          %v1116 = vmul.f32 0.5, %v1115
          %v1117 = vsub.f32 1.5, %v1116
          %v1118 = vmul.f32 %v1113, %v1117
          %v1119 = vmul.f32 %v932, %v1118
          %vm1120 = vcmp.eq.f32.partialorder %v932, inf
          %v1121 = vsel %vm1120, %v932, %v1119
          %vm1122 = vcmp.eq.f32.partialorder %v932, 0.0
          %v1123 = vand.u32 %v932, 2147483648
          %v1124 = vsel %vm1122, %v1123, %v1121
          %v1125 = vld [vmem:[%s614] sm:$0xff]
          %v1126 = vld [vmem:[%s614 + $0x8] sm:$0xff]
          %v1127 = vld [vmem:[%s614 + $0x10] sm:$0xff]
          %v1128 = vld [vmem:[%s614 + $0x18] sm:$0xff]
          %v1129 = vld [vmem:[%s614 + $0x20] sm:$0xff]
          %v1130 = vld [vmem:[%s614 + $0x28] sm:$0xff]
          %v1131 = vld [vmem:[%s614 + $0x30] sm:$0xff]
          %v1132 = vld [vmem:[%s614 + $0x38] sm:$0xff]
          %v1133 = vld [vmem:[%s614 + $0x40] sm:$0xff]
          %v1134 = vld [vmem:[%s614 + $0x48] sm:$0xff]
          %v1135 = vld [vmem:[%s614 + $0x50] sm:$0xff]
          %v1136 = vld [vmem:[%s614 + $0x58] sm:$0xff]
          %v1137 = vld [vmem:[%s614 + $0x60] sm:$0xff]
          %v1138 = vld [vmem:[%s614 + $0x68] sm:$0xff]
          %v1139 = vld [vmem:[%s614 + $0x70] sm:$0xff]
          %v1140 = vld [vmem:[%s614 + $0x78] sm:$0xff]
          %v1141 = vld [vmem:[%s624] sm:$0x1]
          %1142 = vset.pattern.permute.xlu0 0
          %1143 = vperm.xlu0 %1142, %v1125
          %v1144 = vpop.permute.xlu0 %1143
          %1145 = vset.pattern.permute.xlu0 0
          %1146 = vperm.xlu0 %1145, %v1126
          %v1147 = vpop.permute.xlu0 %1146
          %1148 = vset.pattern.permute.xlu0 0
          %1149 = vperm.xlu0 %1148, %v1127
          %v1150 = vpop.permute.xlu0 %1149
          %1151 = vset.pattern.permute.xlu0 0
          %1152 = vperm.xlu0 %1151, %v1128
          %v1153 = vpop.permute.xlu0 %1152
          %1154 = vset.pattern.permute.xlu0 0
          %1155 = vperm.xlu0 %1154, %v1129
          %v1156 = vpop.permute.xlu0 %1155
          %1157 = vset.pattern.permute.xlu0 0
          %1158 = vperm.xlu0 %1157, %v1130
          %v1159 = vpop.permute.xlu0 %1158
          %1160 = vset.pattern.permute.xlu0 0
          %1161 = vperm.xlu0 %1160, %v1131
          %v1162 = vpop.permute.xlu0 %1161
          %1163 = vset.pattern.permute.xlu0 0
          %1164 = vperm.xlu0 %1163, %v1132
          %v1165 = vpop.permute.xlu0 %1164
          %1166 = vset.pattern.permute.xlu0 0
          %1167 = vperm.xlu0 %1166, %v1133
          %v1168 = vpop.permute.xlu0 %1167
          %1169 = vset.pattern.permute.xlu0 0
          %1170 = vperm.xlu0 %1169, %v1134
          %v1171 = vpop.permute.xlu0 %1170
          %1172 = vset.pattern.permute.xlu0 0
          %1173 = vperm.xlu0 %1172, %v1135
          %v1174 = vpop.permute.xlu0 %1173
          %1175 = vset.pattern.permute.xlu0 0
          %1176 = vperm.xlu0 %1175, %v1136
          %v1177 = vpop.permute.xlu0 %1176
          %1178 = vset.pattern.permute.xlu0 0
          %1179 = vperm.xlu0 %1178, %v1137
          %v1180 = vpop.permute.xlu0 %1179
          %1181 = vset.pattern.permute.xlu0 0
          %1182 = vperm.xlu0 %1181, %v1138
          %v1183 = vpop.permute.xlu0 %1182
          %1184 = vset.pattern.permute.xlu0 0
          %1185 = vperm.xlu0 %1184, %v1139
          %v1186 = vpop.permute.xlu0 %1185
          %1187 = vset.pattern.permute.xlu0 0
          %1188 = vperm.xlu0 %1187, %v1140
          %v1189 = vpop.permute.xlu0 %1188
          %v1190 = vperm.slane %v1141, 0
          %vm1191 = vcmp.eq.s32.totalorder %v1144, %v1190
          %vm1192 = vcmp.eq.s32.totalorder %v1147, %v1190
          %vm1193 = vcmp.eq.s32.totalorder %v1150, %v1190
          %vm1194 = vcmp.eq.s32.totalorder %v1153, %v1190
          %vm1195 = vcmp.eq.s32.totalorder %v1156, %v1190
          %vm1196 = vcmp.eq.s32.totalorder %v1159, %v1190
          %vm1197 = vcmp.eq.s32.totalorder %v1162, %v1190
          %vm1198 = vcmp.eq.s32.totalorder %v1165, %v1190
          %vm1199 = vcmp.eq.s32.totalorder %v1168, %v1190
          %vm1200 = vcmp.eq.s32.totalorder %v1171, %v1190
          %vm1201 = vcmp.eq.s32.totalorder %v1174, %v1190
          %vm1202 = vcmp.eq.s32.totalorder %v1177, %v1190
          %vm1203 = vcmp.eq.s32.totalorder %v1180, %v1190
          %vm1204 = vcmp.eq.s32.totalorder %v1183, %v1190
          %vm1205 = vcmp.eq.s32.totalorder %v1186, %v1190
          %vm1206 = vcmp.eq.s32.totalorder %v1189, %v1190
          %v1207 = vld [vmem:[%s635] sm:$0xff]
          %v1208 = vld [vmem:[%s635 + $0x8] sm:$0xff]
          %v1209 = vld [vmem:[%s635 + $0x10] sm:$0xff]
          %v1210 = vld [vmem:[%s635 + $0x18] sm:$0xff]
          %v1211 = vld [vmem:[%s635 + $0x20] sm:$0xff]
          %v1212 = vld [vmem:[%s635 + $0x28] sm:$0xff]
          %v1213 = vld [vmem:[%s635 + $0x30] sm:$0xff]
          %v1214 = vld [vmem:[%s635 + $0x38] sm:$0xff]
          %v1215 = vld [vmem:[%s635 + $0x40] sm:$0xff]
          %v1216 = vld [vmem:[%s635 + $0x48] sm:$0xff]
          %v1217 = vld [vmem:[%s635 + $0x50] sm:$0xff]
          %v1218 = vld [vmem:[%s635 + $0x58] sm:$0xff]
          %v1219 = vld [vmem:[%s635 + $0x60] sm:$0xff]
          %v1220 = vld [vmem:[%s635 + $0x68] sm:$0xff]
          %v1221 = vld [vmem:[%s635 + $0x70] sm:$0xff]
          %v1222 = vld [vmem:[%s635 + $0x78] sm:$0xff]
          %v1223 = vld [vmem:[%s645] sm:$0x1]
          %1224 = vset.pattern.permute.xlu0 0
          %1225 = vperm.xlu0 %1224, %v1207
          %v1226 = vpop.permute.xlu0 %1225
          %1227 = vset.pattern.permute.xlu0 0
          %1228 = vperm.xlu0 %1227, %v1208
          %v1229 = vpop.permute.xlu0 %1228
          %1230 = vset.pattern.permute.xlu0 0
          %1231 = vperm.xlu0 %1230, %v1209
          %v1232 = vpop.permute.xlu0 %1231
          %1233 = vset.pattern.permute.xlu0 0
          %1234 = vperm.xlu0 %1233, %v1210
          %v1235 = vpop.permute.xlu0 %1234
          %1236 = vset.pattern.permute.xlu0 0
          %1237 = vperm.xlu0 %1236, %v1211
          %v1238 = vpop.permute.xlu0 %1237
          %1239 = vset.pattern.permute.xlu0 0
          %1240 = vperm.xlu0 %1239, %v1212
          %v1241 = vpop.permute.xlu0 %1240
          %1242 = vset.pattern.permute.xlu0 0
          %1243 = vperm.xlu0 %1242, %v1213
          %v1244 = vpop.permute.xlu0 %1243
          %1245 = vset.pattern.permute.xlu0 0
          %1246 = vperm.xlu0 %1245, %v1214
          %v1247 = vpop.permute.xlu0 %1246
          %1248 = vset.pattern.permute.xlu0 0
          %1249 = vperm.xlu0 %1248, %v1215
          %v1250 = vpop.permute.xlu0 %1249
          %1251 = vset.pattern.permute.xlu0 0
          %1252 = vperm.xlu0 %1251, %v1216
          %v1253 = vpop.permute.xlu0 %1252
          %1254 = vset.pattern.permute.xlu0 0
          %1255 = vperm.xlu0 %1254, %v1217
          %v1256 = vpop.permute.xlu0 %1255
          %1257 = vset.pattern.permute.xlu0 0
          %1258 = vperm.xlu0 %1257, %v1218
          %v1259 = vpop.permute.xlu0 %1258
          %1260 = vset.pattern.permute.xlu0 0
          %1261 = vperm.xlu0 %1260, %v1219
          %v1262 = vpop.permute.xlu0 %1261
          %1263 = vset.pattern.permute.xlu0 0
          %1264 = vperm.xlu0 %1263, %v1220
          %v1265 = vpop.permute.xlu0 %1264
          %1266 = vset.pattern.permute.xlu0 0
          %1267 = vperm.xlu0 %1266, %v1221
          %v1268 = vpop.permute.xlu0 %1267
          %1269 = vset.pattern.permute.xlu0 0
          %1270 = vperm.xlu0 %1269, %v1222
          %v1271 = vpop.permute.xlu0 %1270
          %v1272 = vperm.slane %v1223, 0
          %vm1273 = vcmp.ne.s32.totalorder %v1226, %v1272
          %vm1274 = vcmp.ne.s32.totalorder %v1229, %v1272
          %vm1275 = vcmp.ne.s32.totalorder %v1232, %v1272
          %vm1276 = vcmp.ne.s32.totalorder %v1235, %v1272
          %vm1277 = vcmp.ne.s32.totalorder %v1238, %v1272
          %vm1278 = vcmp.ne.s32.totalorder %v1241, %v1272
          %vm1279 = vcmp.ne.s32.totalorder %v1244, %v1272
          %vm1280 = vcmp.ne.s32.totalorder %v1247, %v1272
          %vm1281 = vcmp.ne.s32.totalorder %v1250, %v1272
          %vm1282 = vcmp.ne.s32.totalorder %v1253, %v1272
          %vm1283 = vcmp.ne.s32.totalorder %v1256, %v1272
          %vm1284 = vcmp.ne.s32.totalorder %v1259, %v1272
          %vm1285 = vcmp.ne.s32.totalorder %v1262, %v1272
          %vm1286 = vcmp.ne.s32.totalorder %v1265, %v1272
          %vm1287 = vcmp.ne.s32.totalorder %v1268, %v1272
          %vm1288 = vcmp.ne.s32.totalorder %v1271, %v1272
          %vm1289 = vmand %vm1191, %vm1273
          %vm1290 = vmand %vm1192, %vm1274
          %vm1291 = vmand %vm1193, %vm1275
          %vm1292 = vmand %vm1194, %vm1276
          %vm1293 = vmand %vm1195, %vm1277
          %vm1294 = vmand %vm1196, %vm1278
          %vm1295 = vmand %vm1197, %vm1279
          %vm1296 = vmand %vm1198, %vm1280
          %vm1297 = vmand %vm1199, %vm1281
          %vm1298 = vmand %vm1200, %vm1282
          %vm1299 = vmand %vm1201, %vm1283
          %vm1300 = vmand %vm1202, %vm1284
          %vm1301 = vmand %vm1203, %vm1285
          %vm1302 = vmand %vm1204, %vm1286
          %vm1303 = vmand %vm1205, %vm1287
          %vm1304 = vmand %vm1206, %vm1288
          %v1305 = vsel %vm1289, %v944, 0.0
          %v1306 = vsel %vm1290, %v956, 0.0
          %v1307 = vsel %vm1291, %v968, 0.0
          %v1308 = vsel %vm1292, %v980, 0.0
          %v1309 = vsel %vm1293, %v992, 0.0
          %v1310 = vsel %vm1294, %v1004, 0.0
          %v1311 = vsel %vm1295, %v1016, 0.0
          %v1312 = vsel %vm1296, %v1028, 0.0
          %v1313 = vsel %vm1297, %v1040, 0.0
          %v1314 = vsel %vm1298, %v1052, 0.0
          %v1315 = vsel %vm1299, %v1064, 0.0
          %v1316 = vsel %vm1300, %v1076, 0.0
          %v1317 = vsel %vm1301, %v1088, 0.0
          %v1318 = vsel %vm1302, %v1100, 0.0
          %v1319 = vsel %vm1303, %v1112, 0.0
          %v1320 = vsel %vm1304, %v1124, 0.0
          %v1321 = vadd.f32 %v1305, %v1306
          %v1322 = vadd.f32 %v1321, %v1307
          %v1323 = vadd.f32 %v1322, %v1308
          %v1324 = vadd.f32 %v1323, %v1309
          %v1325 = vadd.f32 %v1324, %v1310
          %v1326 = vadd.f32 %v1325, %v1311
          %v1327 = vadd.f32 %v1326, %v1312
          %v1328 = vadd.f32 %v1327, %v1313
          %v1329 = vadd.f32 %v1328, %v1314
          %v1330 = vadd.f32 %v1329, %v1315
          %v1331 = vadd.f32 %v1330, %v1316
          %v1332 = vadd.f32 %v1331, %v1317
          %v1333 = vadd.f32 %v1332, %v1318
          %v1334 = vadd.f32 %v1333, %v1319
          %v1335 = vadd.f32 %v1334, %v1320
          %v1336 = vld [vmem:[%s561] sm:$0xff]
          %s1337 = scvt.s32.f32 %s658
          %v1338 = vstv %s1337
          %v1339 = vmul.f32 %v1338, %v1335
          %v1340 = vadd.f32 %v1336, %v1339
          %1341 = vst [vmem:[%s561] sm:$0xff] %v1340
        $region60: #{tpu_custom_call.1} parent=51 // pred_fallthru
          _
        %s1342 = sand.u32 %s331, 1
        %s1343 = scalar_lea.sflag [#allocation9], %s1342
        %s1344 = sand.u32 %s331, 1
        %s1345 = smul.addr %s1344, 8
        %s1346 = scalar_lea.vmem [#allocation8], %s1345
        // Predicated region
        $region61: #{tpu_custom_call.1} parent=51 // pred_check
          %p1347 = pneg %p341
        $region62: #{tpu_custom_call.1} parent=51 // pred_check_branch
          %1349 = sbr.rel (%p1347) target = $region64
        $region63: #{tpu_custom_call.1} parent=51 // pred_region
          %1351 = vsyncadd %s1343, 0
          %s1352 = smul.addr %s59, 8
          %s1353 = scalar_lea.hbm %s13, %s1352
          %s1355 = sshll.u32 %s1346, 4
          %s1356 = int_to_ptr.vmem [resolvable:$true] %s1355
          %s1357 = sshll.u32 %s1353, 4
          %s1358 = int_to_ptr.hbm [resolvable:$true] %s1357
          %1360 = dma.vmem_to_hbm [thread:$0]  %s1356, 128, %s1358, %s1343
        $region64: #{tpu_custom_call.1} parent=51 // pred_fallthru
          _
      $region52: #{tpu_custom_call.1} parent=5 // pred_fallthru
        _
      %p1361 = scmp.le.s32.totalorder 2, %s50
      // Predicated region
      $region65: #{tpu_custom_call.1} parent=5 // pred_check
        %p1362 = pneg %p1361
      $region66: #{tpu_custom_call.1} parent=5 // pred_check_branch
        %1364 = sbr.rel (%p1362) target = $region68
      $region67: #{tpu_custom_call.1} parent=5 // pred_region
        %s1365 = ssub.s32 %s50, 2
        // Predicated region
        $region69: #{tpu_custom_call.1} parent=67 // pred_check
          %p1366 = pneg %p347
        $region70: #{tpu_custom_call.1} parent=67 // pred_check_branch
          %1368 = sbr.rel (%p1366) target = $region72
        $region71: #{tpu_custom_call.1} parent=67 // pred_region
          %s1369 = sand.u32 %s332, 1
          %s1370 = scalar_lea.sflag [#allocation9], %s1369
          %s1371 = sand.u32 %s332, 1
          %s1372 = smul.addr %s1371, 8
          %s1373 = scalar_lea.vmem [#allocation8], %s1372
          %1375 = dma.done %s1370, 128
        $region72: #{tpu_custom_call.1} parent=67 // pred_fallthru
          _
      $region68: #{tpu_custom_call.1} parent=5 // pred_fallthru
        _
    $region6: #{tpu_custom_call.1} parent=1 // loop_footer
      %s54 = sadd.s32 1, %s50
    $region7: #{tpu_custom_call.1} parent=1 // loop_footer_branch
      %49 = sbr.rel target = $region3
    $region8: #{tpu_custom_call.1} parent=1 // loop_exit
      _
    %1376 = vsyncpa [#allocation9], 1
    %s1377 = scalar_lea.sflag [#allocation9], 1
    %1378 = vsyncpa %s1377, 1

</llo_original>
